<compile_context>
chip_gen: v7x
topology: tpu7x:2x2x1
jax: 0.10.0
libtpu: 0.0.40
codegen_flags: <defaults>
</compile_context>

<pallas_src>
import functools
import math

import jax
import jax.numpy as jnp
from jax.experimental import pallas as pl
from jax.experimental.pallas import tpu as pltpu


def sinu_posn_embedding(max_len: int, dim: int) -> jnp.ndarray:
    position = jnp.arange(max_len, dtype=jnp.float32)[:, None]
    div_term = jnp.exp(
        jnp.arange(0, dim, 2, dtype=jnp.float32) * (-(math.log(10000.0) / dim))
    )
    arg = position * div_term                              # [max_len, dim//2]
    # even indices -> sin, odd indices -> cos
    pe = jnp.stack([jnp.sin(arg), jnp.cos(arg)], axis=-1).reshape(max_len, dim)
    return pe


def cross_attention_kernel(x_ref, kv_ref, wqT_ref, wkvT_ref, wo_ref,
                           qbias_ref, bkv_ref, bo_ref,
                           kmask_ref, vmask_ref, blk_ref, blkT_ref,
                           out_ref, *, n_heads):
    # x_ref : [Bb, C, T]   channels-first query block (also the residual input)
    # kv_ref: [Bb, Tk, C]
    Bb, C, T = x_ref.shape
    Tk = kv_ref.shape[1]
    f32 = jnp.float32

    wqT = wqT_ref[...]       # [C, C]        (scale folded in)
    wkvT = wkvT_ref[...]     # [C, 2C]       ([Wk^T | Wv^T])
    wo = wo_ref[...]         # [C, C]        row-major (out_ch, in_ch)
    qbias = qbias_ref[...]   # [T, C]        (pe @ Wq^T + bq) * scale
    bkv = bkv_ref[...]       # [1, 2C]
    bo = bo_ref[...]         # [C, 1]        column bias for channels-first output
    kmask = kmask_ref[...]   # [C, H*Tk]     head-block indicator (channel-major)
    vmask = vmask_ref[...]   # [H*Tk, C]     head-block indicator (row-major)
    blk = blk_ref[...]       # [H*Tk, H]     packed-lane -> head indicator
    blkT = blkT_ref[...]     # [H, H*Tk]

    for b in range(Bb):      # Bb is tiny (1..4); static unroll
        x_b = x_ref[b]       # [C, T]
        kv_b = kv_ref[b]     # [Tk, C]

        # Q projection: contract over the channel (sublane) axis of the
        # channels-first slab directly -> [T, C]; no XLU transpose of x.
        q = jax.lax.dot_general(x_b, wqT, (((0,), (0,)), ((), ())),
                                preferred_element_type=f32) + qbias

        # Fused K/V projection: one [Tk, C] @ [C, 2C] matmul.
        kvp = jnp.dot(kv_b, wkvT, preferred_element_type=f32) + bkv    # [Tk, 2C]
        k = kvp[:, :C]                                                 # [Tk, C]
        v = kvp[:, C:]                                                 # [Tk, C]

        # Replicate K channel-major and V row-major once per head, zeroing the
        # channels of other heads, so a single MXU op covers every head.
        k_rep = jnp.tile(k.T, (1, n_heads)) * kmask                    # [C, H*Tk]
        v_rep = jnp.tile(v, (n_heads, 1)) * vmask                      # [H*Tk, C]

        # Packed scores in the native MXU form (scale already folded into Q).
        s = jnp.dot(q, k_rep, preferred_element_type=f32)              # [T, H*Tk]

        # Per-head softmax along the packed lane axis. Subtracting the shared
        # row-wise max is exact (shift-invariant per head segment); per-head
        # denominators are broadcast back with two skinny matmuls.
        m = jnp.max(s, axis=-1, keepdims=True)
        p = jnp.exp(s - m)
        denom = jnp.dot(jnp.dot(p, blk, preferred_element_type=f32), blkT,
                        preferred_element_type=f32)                    # [T, H*Tk]
        p = p * pl.reciprocal(denom, approx=False)   # approx=True in production

        attn = jnp.dot(p, v_rep, preferred_element_type=f32)           # [T, C]

        # Output projection produced channels-first: Wo @ attn^T -> [C, T].
        # Residual uses pre-positional-embedding x; no transpose in the store.
        out_cT = jax.lax.dot_general(wo, attn, (((1,), (1,)), ((), ())),
                                     preferred_element_type=f32) + bo
        out_ref[b, :, :] = x_b + out_cT


def _pick_batch_block(batch: int) -> int:
    """Aim for >=2 (ideally ~4) grid steps: gives the Pallas pipeline something
    to double-buffer on single-TC chips (v5e/v6e) and lets v7x shard the
    'parallel' batch axis across its two TensorCores."""
    bb = max(1, batch // 4)
    while batch % bb:
        bb -= 1
    return bb


def head_packing_constants(C, Tk, n_heads):
    """Tiny f32 constants for the packed-head formulation (built once in the
    wrapper, fetched once by the kernel via constant-index BlockSpecs)."""
    dh = C // n_heads
    HT = n_heads * Tk
    ch_head = jnp.arange(C, dtype=jnp.int32) // dh               # channel -> head
    row_head = jnp.arange(HT, dtype=jnp.int32) // Tk              # packed lane -> head
    kmask = (ch_head[:, None] == row_head[None, :]).astype(jnp.float32)   # [C, HT]
    vmask = kmask.T                                                        # [HT, C]
    heads = jnp.arange(n_heads, dtype=jnp.int32)
    blk = (row_head[:, None] == heads[None, :]).astype(jnp.float32)       # [HT, H]
    blkT = blk.T                                                           # [H, HT]
    return kmask, vmask, blk, blkT


def cross_attention(x_bct, kv_btc, params, n_heads, *, batch_block=None):
    """x_bct: [B, C, T] f32; kv_btc: [B, Tk, C] f32 -> [B, C, T] f32."""
    B, C, T = x_bct.shape
    Tk = kv_btc.shape[1]
    wqT, wkvT, wo, qbias, bkv, bo = params
    assert C % n_heads == 0, "channels must be divisible by n_heads"
    assert qbias.shape == (T, C), "folded q bias must match (T, C)"

    HT = n_heads * Tk
    kmask, vmask, blk, blkT = head_packing_constants(C, Tk, n_heads)

    bb = batch_block if batch_block is not None else _pick_batch_block(B)
    bb = max(1, min(bb, B))
    assert B % bb == 0

    kernel = functools.partial(cross_attention_kernel, n_heads=n_heads)
    const = lambda i: (0, 0)

    # All operands are a few tens of KB at these shapes. At production C the
    # constant-index weights should be bf16 and/or single-buffered
    # (pipeline_mode=pl.Buffered(1)) with vmem_limit_bytes set explicitly,
    # which matters most on v7x (64 MiB VMEM).
    return pl.pallas_call(
        kernel,
        out_shape=jax.ShapeDtypeStruct((B, C, T), jnp.float32),
        grid=(B // bb,),
        in_specs=[
            pl.BlockSpec((bb, C, T), lambda i: (i, 0, 0)),    # x  (channels-first)
            pl.BlockSpec((bb, Tk, C), lambda i: (i, 0, 0)),   # kv
            pl.BlockSpec((C, C), const),                      # Wq^T * scale
            pl.BlockSpec((C, 2 * C), const),                  # [Wk^T | Wv^T]
            pl.BlockSpec((C, C), const),                      # Wo (row-major)
            pl.BlockSpec((T, C), const),                      # (pe@Wq^T + bq) * scale
            pl.BlockSpec((1, 2 * C), const),                  # [bk | bv]
            pl.BlockSpec((C, 1), const),                      # bo as a column
            pl.BlockSpec((C, HT), const),                     # K replication mask
            pl.BlockSpec((HT, C), const),                     # V replication mask
            pl.BlockSpec((HT, n_heads), const),               # lane->head indicator
            pl.BlockSpec((n_heads, HT), const),               # its transpose
        ],
        out_specs=pl.BlockSpec((bb, C, T), lambda i: (i, 0, 0)),
        compiler_params=pltpu.CompilerParams(dimension_semantics=("parallel",)),
    )(x_bct, kv_btc, wqT, wkvT, wo, qbias, bkv, bo, kmask, vmask, blk, blkT)


def pack_params(in_proj_w, in_proj_b, out_proj_w, out_proj_b, pe, T, n_heads):
    """One-time parameter packing (done once per model in practice)."""
    C = out_proj_w.shape[0]
    dh = C // n_heads
    scale = 1.0 / math.sqrt(dh)
    wq, wk, wv = in_proj_w[:C], in_proj_w[C:2 * C], in_proj_w[2 * C:]
    bq, bk, bv = in_proj_b[:C], in_proj_b[C:2 * C], in_proj_b[2 * C:]
    wqT = wq.T * scale                                        # scale folded into Q weight
    qbias = (pe[:T, :] @ wq.T + bq[None, :]) * scale          # pe + bias folded, scaled
    wkvT = jnp.concatenate([wk.T, wv.T], axis=1)              # [C, 2C]
    bkv = jnp.concatenate([bk, bv])[None, :]                  # [1, 2C]
    wo = out_proj_w                                           # [C_out, C_in] row-major
    bo = out_proj_b[:, None]                                  # [C, 1] column bias
    return wqT, wkvT, wo, qbias, bkv, bo


def reference(x_bct, kv, pe, wq, wk, wv, wo, bq, bk, bv, bo, n_heads):
    """Plain-JAX reference mirroring nn.MultiheadAttention (batch_first)."""
    B, C, T = x_bct.shape
    x = jnp.transpose(x_bct, (0, 2, 1))
    attn_in = x + pe[None, :T, :]
    q = attn_in @ wq.T + bq
    k = kv @ wk.T + bk
    v = kv @ wv.T + bv
    dh = C // n_heads
    qh = q.reshape(B, T, n_heads, dh).transpose(0, 2, 1, 3)
    kh = k.reshape(B, -1, n_heads, dh).transpose(0, 2, 1, 3)
    vh = v.reshape(B, -1, n_heads, dh).transpose(0, 2, 1, 3)
    s = jnp.einsum("bhqd,bhkd->bhqk", qh, kh) / math.sqrt(dh)
    p = jax.nn.softmax(s, axis=-1)
    o = jnp.einsum("bhqk,bhkd->bhqd", p, vh).transpose(0, 2, 1, 3).reshape(B, T, C)
    attn_out = o @ wo.T + bo
    return jnp.transpose(x + attn_out, (0, 2, 1))


if __name__ == "__main__":
    B, C, T, Tk, H = 2, 32, 16, 8, 4
    MAX_LEN = 64

    key = jax.random.PRNGKey(0)
    kx, kkv, kin_w, kin_b, kout_w, kout_b = jax.random.split(key, 6)

    x = jax.random.normal(kx, (B, C, T), dtype=jnp.float32)        # query, [B, C, T]
    kv = jax.random.normal(kkv, (B, Tk, C), dtype=jnp.float32)     # key/value, [B, Tk, C]

    # Deterministic synthetic MultiheadAttention parameters.
    in_proj_w = 0.05 * jax.random.normal(kin_w, (3 * C, C), dtype=jnp.float32)
    in_proj_b = 0.05 * jax.random.normal(kin_b, (3 * C,), dtype=jnp.float32)
    out_proj_w = 0.05 * jax.random.normal(kout_w, (C, C), dtype=jnp.float32)
    out_proj_b = 0.05 * jax.random.normal(kout_b, (C,), dtype=jnp.float32)

    pe = sinu_posn_embedding(MAX_LEN, C)
    params = pack_params(in_proj_w, in_proj_b, out_proj_w, out_proj_b, pe, T, H)

    out = jax.block_until_ready(cross_attention(x, kv, params, H))

    wq, wk, wv = in_proj_w[:C], in_proj_w[C:2 * C], in_proj_w[2 * C:]
    bq, bk, bv = in_proj_b[:C], in_proj_b[C:2 * C], in_proj_b[2 * C:]
    ref = reference(x, kv, pe, wq, wk, wv, out_proj_w, bq, bk, bv, out_proj_b, H)

    assert out.shape == (B, C, T)
    assert jnp.allclose(out, ref, atol=1e-4, rtol=1e-4), "mismatch vs JAX reference"

    print("KERNEL_OK")
</pallas_src>

<mosaic_0001>
module attributes {stable_mosaic.version = 11 : i64} {
  func.func @cross_attention_kernel(%arg0: i32, %arg1: memref<1x32x16xf32, #tpu.memory_space<vmem>>, %arg2: memref<1x8x32xf32, #tpu.memory_space<vmem>>, %arg3: memref<32x32xf32, #tpu.memory_space<vmem>>, %arg4: memref<32x64xf32, #tpu.memory_space<vmem>>, %arg5: memref<32x32xf32, #tpu.memory_space<vmem>>, %arg6: memref<16x32xf32, #tpu.memory_space<vmem>>, %arg7: memref<1x64xf32, #tpu.memory_space<vmem>>, %arg8: memref<32x1xf32, #tpu.memory_space<vmem>>, %arg9: memref<32x32xf32, #tpu.memory_space<vmem>>, %arg10: memref<32x32xf32, #tpu.memory_space<vmem>>, %arg11: memref<32x4xf32, #tpu.memory_space<vmem>>, %arg12: memref<4x32xf32, #tpu.memory_space<vmem>>, %arg13: memref<1x32x16xf32, #tpu.memory_space<vmem>>) attributes {dimension_semantics = [#tpu.dimension_semantics<parallel>], iteration_bounds = array<i64: 2>, scalar_prefetch = 0 : i64, scratch_operands = 0 : i64, tpu.core_type = #tpu.core_type<tc>, window_params = [{transform_indices = @transform_0, window_bounds = array<i64: 1, 32, 16>}, {transform_indices = @transform_1, window_bounds = array<i64: 1, 8, 32>}, {pipeline_mode = #tpu.pipeline_mode<synchronous>, transform_indices = @transform_2, window_bounds = array<i64: 32, 32>}, {pipeline_mode = #tpu.pipeline_mode<synchronous>, transform_indices = @transform_3, window_bounds = array<i64: 32, 64>}, {pipeline_mode = #tpu.pipeline_mode<synchronous>, transform_indices = @transform_4, window_bounds = array<i64: 32, 32>}, {pipeline_mode = #tpu.pipeline_mode<synchronous>, transform_indices = @transform_5, window_bounds = array<i64: 16, 32>}, {pipeline_mode = #tpu.pipeline_mode<synchronous>, transform_indices = @transform_6, window_bounds = array<i64: 1, 64>}, {pipeline_mode = #tpu.pipeline_mode<synchronous>, transform_indices = @transform_7, window_bounds = array<i64: 32, 1>}, {pipeline_mode = #tpu.pipeline_mode<synchronous>, transform_indices = @transform_8, window_bounds = array<i64: 32, 32>}, {pipeline_mode = #tpu.pipeline_mode<synchronous>, transform_indices = @transform_9, window_bounds = array<i64: 32, 32>}, {pipeline_mode = #tpu.pipeline_mode<synchronous>, transform_indices = @transform_10, window_bounds = array<i64: 32, 4>}, {pipeline_mode = #tpu.pipeline_mode<synchronous>, transform_indices = @transform_11, window_bounds = array<i64: 4, 32>}, {transform_indices = @transform_12, window_bounds = array<i64: 1, 32, 16>}]} {
    %c0 = arith.constant 0 : index
    %c0_0 = arith.constant 0 : index
    %0 = vector.load %arg3[%c0, %c0_0] : memref<32x32xf32, #tpu.memory_space<vmem>>, vector<32x32xf32>
    %c0_1 = arith.constant 0 : index
    %c0_2 = arith.constant 0 : index
    %1 = vector.load %arg4[%c0_1, %c0_2] : memref<32x64xf32, #tpu.memory_space<vmem>>, vector<32x64xf32>
    %c0_3 = arith.constant 0 : index
    %c0_4 = arith.constant 0 : index
    %2 = vector.load %arg5[%c0_3, %c0_4] : memref<32x32xf32, #tpu.memory_space<vmem>>, vector<32x32xf32>
    %c0_5 = arith.constant 0 : index
    %c0_6 = arith.constant 0 : index
    %3 = vector.load %arg6[%c0_5, %c0_6] : memref<16x32xf32, #tpu.memory_space<vmem>>, vector<16x32xf32>
    %c0_7 = arith.constant 0 : index
    %c0_8 = arith.constant 0 : index
    %4 = vector.load %arg7[%c0_7, %c0_8] : memref<1x64xf32, #tpu.memory_space<vmem>>, vector<1x64xf32>
    %c0_9 = arith.constant 0 : index
    %c0_10 = arith.constant 0 : index
    %5 = vector.load %arg8[%c0_9, %c0_10] : memref<32x1xf32, #tpu.memory_space<vmem>>, vector<32x1xf32>
    %c0_11 = arith.constant 0 : index
    %c0_12 = arith.constant 0 : index
    %6 = vector.load %arg9[%c0_11, %c0_12] : memref<32x32xf32, #tpu.memory_space<vmem>>, vector<32x32xf32>
    %c0_13 = arith.constant 0 : index
    %c0_14 = arith.constant 0 : index
    %7 = vector.load %arg10[%c0_13, %c0_14] : memref<32x32xf32, #tpu.memory_space<vmem>>, vector<32x32xf32>
    %c0_15 = arith.constant 0 : index
    %c0_16 = arith.constant 0 : index
    %8 = vector.load %arg11[%c0_15, %c0_16] : memref<32x4xf32, #tpu.memory_space<vmem>>, vector<32x4xf32>
    %c0_17 = arith.constant 0 : index
    %c0_18 = arith.constant 0 : index
    %9 = vector.load %arg12[%c0_17, %c0_18] : memref<4x32xf32, #tpu.memory_space<vmem>>, vector<4x32xf32>
    %c0_19 = arith.constant 0 : index
    %c0_20 = arith.constant 0 : index
    %c0_21 = arith.constant 0 : index
    %10 = vector.load %arg1[%c0_19, %c0_20, %c0_21] : memref<1x32x16xf32, #tpu.memory_space<vmem>>, vector<1x32x16xf32>
    %11 = vector.shape_cast %10 : vector<1x32x16xf32> to vector<32x16xf32>
    %c0_22 = arith.constant 0 : index
    %c0_23 = arith.constant 0 : index
    %c0_24 = arith.constant 0 : index
    %12 = vector.load %arg2[%c0_22, %c0_23, %c0_24] : memref<1x8x32xf32, #tpu.memory_space<vmem>>, vector<1x8x32xf32>
    %13 = vector.shape_cast %12 : vector<1x8x32xf32> to vector<8x32xf32>
    %cst = arith.constant dense<0.000000e+00> : vector<16x32xf32>
    %14 = tpu.matmul %11, %0, %cst {dimension_numbers = #tpu.dot_dimension_numbers<[0], [0], [1], [1], [0, 1, 1, 1], [], []>} : vector<32x16xf32>, vector<32x32xf32>, vector<16x32xf32> -> vector<16x32xf32>
    %15 = arith.addf %14, %3 : vector<16x32xf32>
    %cst_25 = arith.constant dense<0.000000e+00> : vector<8x64xf32>
    %16 = tpu.matmul %13, %1, %cst_25 {dimension_numbers = #tpu.dot_dimension_numbers<[1], [0], [0], [1], [0, 0, 1, 1], [], []>} : vector<8x32xf32>, vector<32x64xf32>, vector<8x64xf32> -> vector<8x64xf32>
    %17 = vector.broadcast %4 : vector<1x64xf32> to vector<8x64xf32>
    %18 = arith.addf %16, %17 : vector<8x64xf32>
    %19 = vector.extract_strided_slice %18 {offsets = [0, 0], sizes = [8, 32], strides = [1, 1]} : vector<8x64xf32> to vector<8x32xf32>
    %20 = vector.extract_strided_slice %18 {offsets = [0, 32], sizes = [8, 32], strides = [1, 1]} : vector<8x64xf32> to vector<8x32xf32>
    %21 = tpu.transpose %19, [1, 0] : vector<8x32xf32> -> vector<32x8xf32>
    %22 = tpu.concatenate %21, %21, %21, %21 in 1 : vector<32x8xf32>, vector<32x8xf32>, vector<32x8xf32>, vector<32x8xf32> -> vector<32x32xf32>
    %23 = arith.mulf %22, %6 : vector<32x32xf32>
    %24 = tpu.concatenate %20, %20, %20, %20 in 0 : vector<8x32xf32>, vector<8x32xf32>, vector<8x32xf32>, vector<8x32xf32> -> vector<32x32xf32>
    %25 = arith.mulf %24, %7 : vector<32x32xf32>
    %cst_26 = arith.constant dense<0.000000e+00> : vector<16x32xf32>
    %26 = tpu.matmul %15, %23, %cst_26 {dimension_numbers = #tpu.dot_dimension_numbers<[1], [0], [0], [1], [0, 0, 1, 1], [], []>} : vector<16x32xf32>, vector<32x32xf32>, vector<16x32xf32> -> vector<16x32xf32>
    %cst_27 = arith.constant dense<0xFF800000> : vector<16xf32>
    %27 = vector.multi_reduction <maximumf>, %26, %cst_27 [1] : vector<16x32xf32> to vector<16xf32>
    %28 = vector.shape_cast %27 : vector<16xf32> to vector<16x1xf32>
    %29 = vector.broadcast %28 : vector<16x1xf32> to vector<16x32xf32>
    %30 = arith.subf %26, %29 : vector<16x32xf32>
    %31 = math.exp %30 : vector<16x32xf32>
    %cst_28 = arith.constant dense<0.000000e+00> : vector<16x4xf32>
    %32 = tpu.matmul %31, %8, %cst_28 {dimension_numbers = #tpu.dot_dimension_numbers<[1], [0], [0], [1], [0, 0, 1, 1], [], []>} : vector<16x32xf32>, vector<32x4xf32>, vector<16x4xf32> -> vector<16x4xf32>
    %cst_29 = arith.constant dense<0.000000e+00> : vector<16x32xf32>
    %33 = tpu.matmul %32, %9, %cst_29 {dimension_numbers = #tpu.dot_dimension_numbers<[1], [0], [0], [1], [0, 0, 1, 1], [], []>} : vector<16x4xf32>, vector<4x32xf32>, vector<16x32xf32> -> vector<16x32xf32>
    %34 = tpu.reciprocal %33 : vector<16x32xf32> -> vector<16x32xf32>
    %35 = arith.mulf %31, %34 : vector<16x32xf32>
    %cst_30 = arith.constant dense<0.000000e+00> : vector<16x32xf32>
    %36 = tpu.matmul %35, %25, %cst_30 {dimension_numbers = #tpu.dot_dimension_numbers<[1], [0], [0], [1], [0, 0, 1, 1], [], []>} : vector<16x32xf32>, vector<32x32xf32>, vector<16x32xf32> -> vector<16x32xf32>
    %cst_31 = arith.constant dense<0.000000e+00> : vector<32x16xf32>
    %37 = tpu.matmul %2, %36, %cst_31 {dimension_numbers = #tpu.dot_dimension_numbers<[1], [1], [0], [0], [0, 0, 1, 0], [], []>} : vector<32x32xf32>, vector<16x32xf32>, vector<32x16xf32> -> vector<32x16xf32>
    %38 = vector.broadcast %5 : vector<32x1xf32> to vector<32x16xf32>
    %39 = arith.addf %37, %38 : vector<32x16xf32>
    %40 = arith.addf %11, %39 : vector<32x16xf32>
    %c0_32 = arith.constant 0 : index
    %c0_33 = arith.constant 0 : index
    %c0_34 = arith.constant 0 : index
    %41 = vector.load %arg13[%c0_32, %c0_33, %c0_34] : memref<1x32x16xf32, #tpu.memory_space<vmem>>, vector<1x32x16xf32>
    %42 = vector.shape_cast %41 : vector<1x32x16xf32> to vector<32x16xf32>
    %43 = vector.shape_cast %40 : vector<32x16xf32> to vector<1x32x16xf32>
    tpu.vector_store %arg13[%c0_32, %c0_33, %c0_34], %43 {strides = array<i32>} : memref<1x32x16xf32, #tpu.memory_space<vmem>>, vector<1x32x16xf32>,
    return
  }
  func.func @transform_0(%arg0: i32) -> (i32, i32, i32) {
    %c0_i32 = arith.constant 0 : i32
    %c0_i32_0 = arith.constant 0 : i32
    %c0_i32_1 = arith.constant 0 : i32
    return %arg0, %c0_i32, %c0_i32_0 : i32, i32, i32
  }
  func.func @transform_1(%arg0: i32) -> (i32, i32, i32) {
    %c0_i32 = arith.constant 0 : i32
    %c0_i32_0 = arith.constant 0 : i32
    %c0_i32_1 = arith.constant 0 : i32
    return %arg0, %c0_i32, %c0_i32_0 : i32, i32, i32
  }
  func.func @transform_2(%arg0: i32) -> (i32, i32) {
    %c0_i32 = arith.constant 0 : i32
    %c0_i32_0 = arith.constant 0 : i32
    %c0_i32_1 = arith.constant 0 : i32
    return %c0_i32, %c0_i32_0 : i32, i32
  }
  func.func @transform_3(%arg0: i32) -> (i32, i32) {
    %c0_i32 = arith.constant 0 : i32
    %c0_i32_0 = arith.constant 0 : i32
    %c0_i32_1 = arith.constant 0 : i32
    return %c0_i32, %c0_i32_0 : i32, i32
  }
  func.func @transform_4(%arg0: i32) -> (i32, i32) {
    %c0_i32 = arith.constant 0 : i32
    %c0_i32_0 = arith.constant 0 : i32
    %c0_i32_1 = arith.constant 0 : i32
    return %c0_i32, %c0_i32_0 : i32, i32
  }
  func.func @transform_5(%arg0: i32) -> (i32, i32) {
    %c0_i32 = arith.constant 0 : i32
    %c0_i32_0 = arith.constant 0 : i32
    %c0_i32_1 = arith.constant 0 : i32
    return %c0_i32, %c0_i32_0 : i32, i32
  }
  func.func @transform_6(%arg0: i32) -> (i32, i32) {
    %c0_i32 = arith.constant 0 : i32
    %c0_i32_0 = arith.constant 0 : i32
    %c0_i32_1 = arith.constant 0 : i32
    return %c0_i32, %c0_i32_0 : i32, i32
  }
  func.func @transform_7(%arg0: i32) -> (i32, i32) {
    %c0_i32 = arith.constant 0 : i32
    %c0_i32_0 = arith.constant 0 : i32
    %c0_i32_1 = arith.constant 0 : i32
    return %c0_i32, %c0_i32_0 : i32, i32
  }
  func.func @transform_8(%arg0: i32) -> (i32, i32) {
    %c0_i32 = arith.constant 0 : i32
    %c0_i32_0 = arith.constant 0 : i32
    %c0_i32_1 = arith.constant 0 : i32
    return %c0_i32, %c0_i32_0 : i32, i32
  }
  func.func @transform_9(%arg0: i32) -> (i32, i32) {
    %c0_i32 = arith.constant 0 : i32
    %c0_i32_0 = arith.constant 0 : i32
    %c0_i32_1 = arith.constant 0 : i32
    return %c0_i32, %c0_i32_0 : i32, i32
  }
  func.func @transform_10(%arg0: i32) -> (i32, i32) {
    %c0_i32 = arith.constant 0 : i32
    %c0_i32_0 = arith.constant 0 : i32
    %c0_i32_1 = arith.constant 0 : i32
    return %c0_i32, %c0_i32_0 : i32, i32
  }
  func.func @transform_11(%arg0: i32) -> (i32, i32) {
    %c0_i32 = arith.constant 0 : i32
    %c0_i32_0 = arith.constant 0 : i32
    %c0_i32_1 = arith.constant 0 : i32
    return %c0_i32, %c0_i32_0 : i32, i32
  }
  func.func @transform_12(%arg0: i32) -> (i32, i32, i32) {
    %c0_i32 = arith.constant 0 : i32
    %c0_i32_0 = arith.constant 0 : i32
    %c0_i32_1 = arith.constant 0 : i32
    return %arg0, %c0_i32, %c0_i32_0 : i32, i32, i32
  }
}

</mosaic_0001>

<llo_original>
// kernel: tpu_custom_call.1
$region0: #{tpu_custom_call.1}
  #allocation0 [shape = 'u32[]', space=smem, size = 0x4, offset = 0x4, fixed_abs, tag = 'smem constant byte address 0x4 - core index']
  #allocation1 [shape = 'u32[144,128]{1,0:T(1,128)}', space=vmem, size = 0x12000, scoped, tag = 'internal scratch']
  %s0 = inlined_call_operand.vmem [shape: f32[2,32,16], index: 0, kind: input, shape index: {}]
  %s1 = inlined_call_operand.hbm [shape: f32[2,8,32], index: 1, kind: input, shape index: {}]
  %s2 = inlined_call_operand.vmem [shape: f32[32,32], index: 2, kind: input, shape index: {}]
  %s3 = inlined_call_operand.vmem [shape: f32[32,64], index: 3, kind: input, shape index: {}]
  %s4 = inlined_call_operand.vmem [shape: f32[32,32], index: 4, kind: input, shape index: {}]
  %s5 = inlined_call_operand.hbm [shape: f32[16,32], index: 5, kind: input, shape index: {}]
  %s6 = inlined_call_operand.vmem [shape: f32[1,64], index: 6, kind: input, shape index: {}]
  %s7 = inlined_call_operand.vmem [shape: f32[32,1], index: 7, kind: input, shape index: {}]
  %s8 = inlined_call_operand.vmem [shape: f32[32,32], index: 8, kind: input, shape index: {}]
  %s9 = inlined_call_operand.vmem [shape: f32[32,32], index: 9, kind: input, shape index: {}]
  %s10 = inlined_call_operand.vmem [shape: f32[32,4], index: 10, kind: input, shape index: {}]
  %s11 = inlined_call_operand.vmem [shape: f32[4,32], index: 11, kind: input, shape index: {}]
  %s12 = inlined_call_operand.vmem [shape: f32[2,32,16], index: 12, kind: output, shape index: {}]
  %s13 = sld [smem:[#allocation0]]
  $region89: #{tpu_custom_call.1} parent=0
    _
  %s15 = ssub.s32 1, %s13
  %s16 = scalar_select 0, %s15, %s13
  $region1: #{tpu_custom_call.1} parent=0
    #allocation2 [shape = 'u8[8192]{0}', space=vmem, size = 0x2000, scoped, tag = 'input window, operand 1']
    #allocation3 [shape = 's32[2]{0}', space=sflag, size = 0x8, scoped, tag = 'scoped memory for tpu_custom_call.1']
    #allocation4 [shape = 'u8[8192]{0}', space=vmem, size = 0x2000, scoped, tag = 'input window, operand 5, single buffered']
    #allocation5 [shape = 's32[1]{0}', space=sflag, size = 0x4, scoped, tag = 'scoped memory for tpu_custom_call.1']
    %17 = vsyncpa [#allocation3], 0
    %s18 = scalar_lea.sflag [#allocation3], 1
    %19 = vsyncpa %s18, 0
    %20 = vsyncpa [#allocation5], 0
    loop: start=0, step=1, limit=4
    $region2: #{tpu_custom_call.1} parent=1 // loop_pre_header
      _
    $region3: #{tpu_custom_call.1} parent=1 // loop_header
      %s22 = sphi 0, %s26
      %p23 = scmp.ge.s32.totalorder %s22, 4
      %s32 = sphi 0, %s34
      %s35 = sphi 0, %s32
      %s36 = sphi 0, %s35
      %s52 = sphi 0, %s36
      %s58 = sphi 0, %s60
      %s61 = sphi 0, %s58
      %s62 = sphi 0, %s61
      %s78 = sphi 0, %s62
      %s82 = sphi 0, %s82
      %s84 = sphi 0, %s82
      %s85 = sphi 0, %s84
      %s99 = sphi 0, %s85
      %s103 = sphi 0, %s103
      %s105 = sphi 0, %s103
      %s106 = sphi 0, %s105
      %s120 = sphi 0, %s106
      %s124 = sphi 0, %s124
      %s126 = sphi 0, %s124
      %s127 = sphi 0, %s126
      %s141 = sphi 0, %s127
      %s145 = sphi 0, %s145
      %s147 = sphi 0, %s145
      %s148 = sphi 0, %s147
      %s162 = sphi 0, %s148
      %s166 = sphi 0, %s166
      %s168 = sphi 0, %s166
      %s169 = sphi 0, %s168
      %s183 = sphi 0, %s169
      %s187 = sphi 0, %s187
      %s189 = sphi 0, %s187
      %s190 = sphi 0, %s189
      %s204 = sphi 0, %s190
      %s208 = sphi 0, %s208
      %s210 = sphi 0, %s208
      %s211 = sphi 0, %s210
      %s225 = sphi 0, %s211
      %s229 = sphi 0, %s229
      %s231 = sphi 0, %s229
      %s232 = sphi 0, %s231
      %s246 = sphi 0, %s232
      %s250 = sphi 0, %s250
      %s252 = sphi 0, %s250
      %s253 = sphi 0, %s252
      %s267 = sphi 0, %s253
      %s271 = sphi 0, %s271
      %s273 = sphi 0, %s271
      %s274 = sphi 0, %s273
      %s288 = sphi 0, %s274
      %s294 = sphi 0, %s296
      %s297 = sphi 0, %s294
      %s298 = sphi 0, %s297
      %s314 = sphi 0, %s298
    $region4: #{tpu_custom_call.1} parent=1 // loop_header_branch
      %25 = sbr.rel (%p23) target = $region8
    $region5: #{tpu_custom_call.1} parent=1 // loop_body
      %s27 = ssub.s32 %s22, 1
      %s28 = ssub.s32 %s22, 2
      %s29 = sadd.s32 %s22, 1
      %s30 = ssub.s32 %s22, %s29
      %p31 = scmp.eq.s32.totalorder %s30, 0
      %s33 = sadd.s32 %s32, 1
      %s34 = scalar_select %p31, %s32, %s33
      %p37 = pneg %p31
      %p38 = scmp.eq.s32.totalorder %s22, 1
      %p39 = por %p37, %p38
      %p40 = scmp.ne.s32.totalorder %s32, %s35
      %p41 = scmp.eq.s32.totalorder %s22, 0
      %p42 = por %p40, %p41
      %p43 = scmp.ne.s32.totalorder %s32, %s35
      %p44 = scmp.eq.s32.totalorder %s27, 1
      %p45 = por %p43, %p44
      %p46 = scmp.ne.s32.totalorder %s35, %s36
      %p47 = scmp.eq.s32.totalorder %s27, 0
      %p48 = por %p46, %p47
      %p49 = scmp.ne.s32.totalorder %s35, %s36
      %p50 = scmp.eq.s32.totalorder %s28, 1
      %p51 = por %p49, %p50
      %p53 = scmp.ne.s32.totalorder %s36, %s52
      %p54 = scmp.eq.s32.totalorder %s28, 0
      %p55 = por %p53, %p54
      %s56 = ssub.s32 %s22, %s29
      %p57 = scmp.eq.s32.totalorder %s56, 0
      %s59 = sadd.s32 %s58, 1
      %s60 = scalar_select %p57, %s58, %s59
      %p63 = pneg %p57
      %p64 = scmp.eq.s32.totalorder %s22, 1
      %p65 = por %p63, %p64
      %p66 = scmp.ne.s32.totalorder %s58, %s61
      %p67 = scmp.eq.s32.totalorder %s22, 0
      %p68 = por %p66, %p67
      %p69 = scmp.ne.s32.totalorder %s58, %s61
      %p70 = scmp.eq.s32.totalorder %s27, 1
      %p71 = por %p69, %p70
      %p72 = scmp.ne.s32.totalorder %s61, %s62
      %p73 = scmp.eq.s32.totalorder %s27, 0
      %p74 = por %p72, %p73
      %p75 = scmp.ne.s32.totalorder %s61, %s62
      %p76 = scmp.eq.s32.totalorder %s28, 1
      %p77 = por %p75, %p76
      %p79 = scmp.ne.s32.totalorder %s62, %s78
      %p80 = scmp.eq.s32.totalorder %s28, 0
      %p81 = por %p79, %p80
      %s83 = sadd.s32 %s82, 1
      %p86 = scmp.eq.s32.totalorder %s22, 1
      %p87 = scmp.ne.s32.totalorder %s82, %s84
      %p88 = scmp.eq.s32.totalorder %s22, 0
      %p89 = por %p87, %p88
      %p90 = scmp.ne.s32.totalorder %s82, %s84
      %p91 = scmp.eq.s32.totalorder %s27, 1
      %p92 = por %p90, %p91
      %p93 = scmp.ne.s32.totalorder %s84, %s85
      %p94 = scmp.eq.s32.totalorder %s27, 0
      %p95 = por %p93, %p94
      %p96 = scmp.ne.s32.totalorder %s84, %s85
      %p97 = scmp.eq.s32.totalorder %s28, 1
      %p98 = por %p96, %p97
      %p100 = scmp.ne.s32.totalorder %s85, %s99
      %p101 = scmp.eq.s32.totalorder %s28, 0
      %p102 = por %p100, %p101
      %s104 = sadd.s32 %s103, 1
      %p107 = scmp.eq.s32.totalorder %s22, 1
      %p108 = scmp.ne.s32.totalorder %s103, %s105
      %p109 = scmp.eq.s32.totalorder %s22, 0
      %p110 = por %p108, %p109
      %p111 = scmp.ne.s32.totalorder %s103, %s105
      %p112 = scmp.eq.s32.totalorder %s27, 1
      %p113 = por %p111, %p112
      %p114 = scmp.ne.s32.totalorder %s105, %s106
      %p115 = scmp.eq.s32.totalorder %s27, 0
      %p116 = por %p114, %p115
      %p117 = scmp.ne.s32.totalorder %s105, %s106
      %p118 = scmp.eq.s32.totalorder %s28, 1
      %p119 = por %p117, %p118
      %p121 = scmp.ne.s32.totalorder %s106, %s120
      %p122 = scmp.eq.s32.totalorder %s28, 0
      %p123 = por %p121, %p122
      %s125 = sadd.s32 %s124, 1
      %p128 = scmp.eq.s32.totalorder %s22, 1
      %p129 = scmp.ne.s32.totalorder %s124, %s126
      %p130 = scmp.eq.s32.totalorder %s22, 0
      %p131 = por %p129, %p130
      %p132 = scmp.ne.s32.totalorder %s124, %s126
      %p133 = scmp.eq.s32.totalorder %s27, 1
      %p134 = por %p132, %p133
      %p135 = scmp.ne.s32.totalorder %s126, %s127
      %p136 = scmp.eq.s32.totalorder %s27, 0
      %p137 = por %p135, %p136
      %p138 = scmp.ne.s32.totalorder %s126, %s127
      %p139 = scmp.eq.s32.totalorder %s28, 1
      %p140 = por %p138, %p139
      %p142 = scmp.ne.s32.totalorder %s127, %s141
      %p143 = scmp.eq.s32.totalorder %s28, 0
      %p144 = por %p142, %p143
      %s146 = sadd.s32 %s145, 1
      %p149 = scmp.eq.s32.totalorder %s22, 1
      %p150 = scmp.ne.s32.totalorder %s145, %s147
      %p151 = scmp.eq.s32.totalorder %s22, 0
      %p152 = por %p150, %p151
      %p153 = scmp.ne.s32.totalorder %s145, %s147
      %p154 = scmp.eq.s32.totalorder %s27, 1
      %p155 = por %p153, %p154
      %p156 = scmp.ne.s32.totalorder %s147, %s148
      %p157 = scmp.eq.s32.totalorder %s27, 0
      %p158 = por %p156, %p157
      %p159 = scmp.ne.s32.totalorder %s147, %s148
      %p160 = scmp.eq.s32.totalorder %s28, 1
      %p161 = por %p159, %p160
      %p163 = scmp.ne.s32.totalorder %s148, %s162
      %p164 = scmp.eq.s32.totalorder %s28, 0
      %p165 = por %p163, %p164
      %s167 = sadd.s32 %s166, 1
      %p170 = scmp.eq.s32.totalorder %s22, 1
      %p171 = scmp.ne.s32.totalorder %s166, %s168
      %p172 = scmp.eq.s32.totalorder %s22, 0
      %p173 = por %p171, %p172
      %p174 = scmp.ne.s32.totalorder %s166, %s168
      %p175 = scmp.eq.s32.totalorder %s27, 1
      %p176 = por %p174, %p175
      %p177 = scmp.ne.s32.totalorder %s168, %s169
      %p178 = scmp.eq.s32.totalorder %s27, 0
      %p179 = por %p177, %p178
      %p180 = scmp.ne.s32.totalorder %s168, %s169
      %p181 = scmp.eq.s32.totalorder %s28, 1
      %p182 = por %p180, %p181
      %p184 = scmp.ne.s32.totalorder %s169, %s183
      %p185 = scmp.eq.s32.totalorder %s28, 0
      %p186 = por %p184, %p185
      %s188 = sadd.s32 %s187, 1
      %p191 = scmp.eq.s32.totalorder %s22, 1
      %p192 = scmp.ne.s32.totalorder %s187, %s189
      %p193 = scmp.eq.s32.totalorder %s22, 0
      %p194 = por %p192, %p193
      %p195 = scmp.ne.s32.totalorder %s187, %s189
      %p196 = scmp.eq.s32.totalorder %s27, 1
      %p197 = por %p195, %p196
      %p198 = scmp.ne.s32.totalorder %s189, %s190
      %p199 = scmp.eq.s32.totalorder %s27, 0
      %p200 = por %p198, %p199
      %p201 = scmp.ne.s32.totalorder %s189, %s190
      %p202 = scmp.eq.s32.totalorder %s28, 1
      %p203 = por %p201, %p202
      %p205 = scmp.ne.s32.totalorder %s190, %s204
      %p206 = scmp.eq.s32.totalorder %s28, 0
      %p207 = por %p205, %p206
      %s209 = sadd.s32 %s208, 1
      %p212 = scmp.eq.s32.totalorder %s22, 1
      %p213 = scmp.ne.s32.totalorder %s208, %s210
      %p214 = scmp.eq.s32.totalorder %s22, 0
      %p215 = por %p213, %p214
      %p216 = scmp.ne.s32.totalorder %s208, %s210
      %p217 = scmp.eq.s32.totalorder %s27, 1
      %p218 = por %p216, %p217
      %p219 = scmp.ne.s32.totalorder %s210, %s211
      %p220 = scmp.eq.s32.totalorder %s27, 0
      %p221 = por %p219, %p220
      %p222 = scmp.ne.s32.totalorder %s210, %s211
      %p223 = scmp.eq.s32.totalorder %s28, 1
      %p224 = por %p222, %p223
      %p226 = scmp.ne.s32.totalorder %s211, %s225
      %p227 = scmp.eq.s32.totalorder %s28, 0
      %p228 = por %p226, %p227
      %s230 = sadd.s32 %s229, 1
      %p233 = scmp.eq.s32.totalorder %s22, 1
      %p234 = scmp.ne.s32.totalorder %s229, %s231
      %p235 = scmp.eq.s32.totalorder %s22, 0
      %p236 = por %p234, %p235
      %p237 = scmp.ne.s32.totalorder %s229, %s231
      %p238 = scmp.eq.s32.totalorder %s27, 1
      %p239 = por %p237, %p238
      %p240 = scmp.ne.s32.totalorder %s231, %s232
      %p241 = scmp.eq.s32.totalorder %s27, 0
      %p242 = por %p240, %p241
      %p243 = scmp.ne.s32.totalorder %s231, %s232
      %p244 = scmp.eq.s32.totalorder %s28, 1
      %p245 = por %p243, %p244
      %p247 = scmp.ne.s32.totalorder %s232, %s246
      %p248 = scmp.eq.s32.totalorder %s28, 0
      %p249 = por %p247, %p248
      %s251 = sadd.s32 %s250, 1
      %p254 = scmp.eq.s32.totalorder %s22, 1
      %p255 = scmp.ne.s32.totalorder %s250, %s252
      %p256 = scmp.eq.s32.totalorder %s22, 0
      %p257 = por %p255, %p256
      %p258 = scmp.ne.s32.totalorder %s250, %s252
      %p259 = scmp.eq.s32.totalorder %s27, 1
      %p260 = por %p258, %p259
      %p261 = scmp.ne.s32.totalorder %s252, %s253
      %p262 = scmp.eq.s32.totalorder %s27, 0
      %p263 = por %p261, %p262
      %p264 = scmp.ne.s32.totalorder %s252, %s253
      %p265 = scmp.eq.s32.totalorder %s28, 1
      %p266 = por %p264, %p265
      %p268 = scmp.ne.s32.totalorder %s253, %s267
      %p269 = scmp.eq.s32.totalorder %s28, 0
      %p270 = por %p268, %p269
      %s272 = sadd.s32 %s271, 1
      %p275 = scmp.eq.s32.totalorder %s22, 1
      %p276 = scmp.ne.s32.totalorder %s271, %s273
      %p277 = scmp.eq.s32.totalorder %s22, 0
      %p278 = por %p276, %p277
      %p279 = scmp.ne.s32.totalorder %s271, %s273
      %p280 = scmp.eq.s32.totalorder %s27, 1
      %p281 = por %p279, %p280
      %p282 = scmp.ne.s32.totalorder %s273, %s274
      %p283 = scmp.eq.s32.totalorder %s27, 0
      %p284 = por %p282, %p283
      %p285 = scmp.ne.s32.totalorder %s273, %s274
      %p286 = scmp.eq.s32.totalorder %s28, 1
      %p287 = por %p285, %p286
      %p289 = scmp.ne.s32.totalorder %s274, %s288
      %p290 = scmp.eq.s32.totalorder %s28, 0
      %p291 = por %p289, %p290
      %s292 = ssub.s32 %s22, %s29
      %p293 = scmp.eq.s32.totalorder %s292, 0
      %s295 = sadd.s32 %s294, 1
      %s296 = scalar_select %p293, %s294, %s295
      %p299 = pneg %p293
      %p300 = scmp.eq.s32.totalorder %s22, 1
      %p301 = por %p299, %p300
      %p302 = scmp.ne.s32.totalorder %s294, %s297
      %p303 = scmp.eq.s32.totalorder %s22, 0
      %p304 = por %p302, %p303
      %p305 = scmp.ne.s32.totalorder %s294, %s297
      %p306 = scmp.eq.s32.totalorder %s27, 1
      %p307 = por %p305, %p306
      %p308 = scmp.ne.s32.totalorder %s297, %s298
      %p309 = scmp.eq.s32.totalorder %s27, 0
      %p310 = por %p308, %p309
      %p311 = scmp.ne.s32.totalorder %s297, %s298
      %p312 = scmp.eq.s32.totalorder %s28, 1
      %p313 = por %p311, %p312
      %p315 = scmp.ne.s32.totalorder %s298, %s314
      %p316 = scmp.eq.s32.totalorder %s28, 0
      %p317 = por %p315, %p316
      %p318 = scmp.le.s32.totalorder 1, %s22
      %p319 = scmp.lt.s32.totalorder %s22, 3
      %p320 = pnand %p318, %p319
      %p321 = pneg %p320
      // Predicated region
      $region9: #{tpu_custom_call.1} parent=5 // pred_check
        _
      $region10: #{tpu_custom_call.1} parent=5 // pred_check_branch
        %323 = sbr.rel (%p320) target = $region12
      $region11: #{tpu_custom_call.1} parent=5 // pred_region
        %s324 = ssub.s32 %s22, 1
        // Predicated region
        $region13: #{tpu_custom_call.1} parent=11 // pred_check
          %p325 = pneg %p95
        $region14: #{tpu_custom_call.1} parent=11 // pred_check_branch
          %327 = sbr.rel (%p325) target = $region16
        $region15: #{tpu_custom_call.1} parent=11 // pred_region
          _
        $region16: #{tpu_custom_call.1} parent=11 // pred_fallthru
          _
        // Predicated region
        $region17: #{tpu_custom_call.1} parent=11 // pred_check
          %p328 = pneg %p116
        $region18: #{tpu_custom_call.1} parent=11 // pred_check_branch
          %330 = sbr.rel (%p328) target = $region20
        $region19: #{tpu_custom_call.1} parent=11 // pred_region
          _
        $region20: #{tpu_custom_call.1} parent=11 // pred_fallthru
          _
        // Predicated region
        $region21: #{tpu_custom_call.1} parent=11 // pred_check
          %p331 = pneg %p137
        $region22: #{tpu_custom_call.1} parent=11 // pred_check_branch
          %333 = sbr.rel (%p331) target = $region24
        $region23: #{tpu_custom_call.1} parent=11 // pred_region
          _
        $region24: #{tpu_custom_call.1} parent=11 // pred_fallthru
          _
        // Predicated region
        $region25: #{tpu_custom_call.1} parent=11 // pred_check
          %p334 = pneg %p158
        $region26: #{tpu_custom_call.1} parent=11 // pred_check_branch
          %336 = sbr.rel (%p334) target = $region28
        $region27: #{tpu_custom_call.1} parent=11 // pred_region
          %s338 = ssub.s32 256, 256
          %339 = vsyncadd [#allocation5], %s338
          %s340 = sshll.u32 [#allocation4], 4
          %s341 = int_to_ptr.vmem [resolvable:$true] %s340
          %346 = dma.hbm_to_vmem [thread:$0]  %s5, 256, %s341, [#allocation5], 128, 128, 8
        $region28: #{tpu_custom_call.1} parent=11 // pred_fallthru
          _
        // Predicated region
        $region29: #{tpu_custom_call.1} parent=11 // pred_check
          %p347 = pneg %p179
        $region30: #{tpu_custom_call.1} parent=11 // pred_check_branch
          %349 = sbr.rel (%p347) target = $region32
        $region31: #{tpu_custom_call.1} parent=11 // pred_region
          _
        $region32: #{tpu_custom_call.1} parent=11 // pred_fallthru
          _
        // Predicated region
        $region33: #{tpu_custom_call.1} parent=11 // pred_check
          %p350 = pneg %p200
        $region34: #{tpu_custom_call.1} parent=11 // pred_check_branch
          %352 = sbr.rel (%p350) target = $region36
        $region35: #{tpu_custom_call.1} parent=11 // pred_region
          _
        $region36: #{tpu_custom_call.1} parent=11 // pred_fallthru
          _
        // Predicated region
        $region37: #{tpu_custom_call.1} parent=11 // pred_check
          %p353 = pneg %p221
        $region38: #{tpu_custom_call.1} parent=11 // pred_check_branch
          %355 = sbr.rel (%p353) target = $region40
        $region39: #{tpu_custom_call.1} parent=11 // pred_region
          _
        $region40: #{tpu_custom_call.1} parent=11 // pred_fallthru
          _
        // Predicated region
        $region41: #{tpu_custom_call.1} parent=11 // pred_check
          %p356 = pneg %p242
        $region42: #{tpu_custom_call.1} parent=11 // pred_check_branch
          %358 = sbr.rel (%p356) target = $region44
        $region43: #{tpu_custom_call.1} parent=11 // pred_region
          _
        $region44: #{tpu_custom_call.1} parent=11 // pred_fallthru
          _
        // Predicated region
        $region45: #{tpu_custom_call.1} parent=11 // pred_check
          %p359 = pneg %p263
        $region46: #{tpu_custom_call.1} parent=11 // pred_check_branch
          %361 = sbr.rel (%p359) target = $region48
        $region47: #{tpu_custom_call.1} parent=11 // pred_region
          _
        $region48: #{tpu_custom_call.1} parent=11 // pred_fallthru
          _
        // Predicated region
        $region49: #{tpu_custom_call.1} parent=11 // pred_check
          %p362 = pneg %p284
        $region50: #{tpu_custom_call.1} parent=11 // pred_check_branch
          %364 = sbr.rel (%p362) target = $region52
        $region51: #{tpu_custom_call.1} parent=11 // pred_region
          _
        $region52: #{tpu_custom_call.1} parent=11 // pred_fallthru
          _
      $region12: #{tpu_custom_call.1} parent=5 // pred_fallthru
        _
      %p365 = scmp.lt.s32.totalorder %s22, 2
      // Predicated region
      $region53: #{tpu_custom_call.1} parent=5 // pred_check
        %p366 = pneg %p365
      $region54: #{tpu_custom_call.1} parent=5 // pred_check_branch
        %368 = sbr.rel (%p366) target = $region56
      $region55: #{tpu_custom_call.1} parent=5 // pred_region
        // Predicated region
        $region57: #{tpu_custom_call.1} parent=55 // pred_check
          %p369 = pneg %p42
        $region58: #{tpu_custom_call.1} parent=55 // pred_check_branch
          %371 = sbr.rel (%p369) target = $region60
        $region59: #{tpu_custom_call.1} parent=55 // pred_region
          %p372 = scmp.lt.s32.totalorder %s22, 1
          %s373 = scalar_select %p372, %s22, 1
          %s374 = smul.addr %s373, 4
          %s375 = smul.addr %s374, 8
          %s376 = scalar_lea.vmem %s0, %s375
        $region60: #{tpu_custom_call.1} parent=55 // pred_fallthru
          _
        // Predicated region
        $region61: #{tpu_custom_call.1} parent=55 // pred_check
          %p377 = pneg %p68
        $region62: #{tpu_custom_call.1} parent=55 // pred_check_branch
          %379 = sbr.rel (%p377) target = $region64
        $region63: #{tpu_custom_call.1} parent=55 // pred_region
          %s380 = sand.u32 %s58, 1
          %s381 = scalar_lea.sflag [#allocation3], %s380
          %s382 = sand.u32 %s58, 1
          %s383 = smul.addr %s382, 8
          %s384 = scalar_lea.vmem [#allocation2], %s383
          %s386 = ssub.s32 128, 128
          %387 = vsyncadd %s381, %s386
          %s388 = smul.addr %s22, 128
          %s389 = scalar_lea.hbm %s1, %s388
          %s391 = sshll.u32 %s384, 4
          %s392 = int_to_ptr.vmem [resolvable:$true] %s391
          %394 = dma.hbm_to_vmem [thread:$0]  %s389, 128, %s392, %s381
        $region64: #{tpu_custom_call.1} parent=55 // pred_fallthru
          _
      $region56: #{tpu_custom_call.1} parent=5 // pred_fallthru
        _
      %p395 = scmp.le.s32.totalorder 1, %s22
      %p396 = scmp.lt.s32.totalorder %s22, 3
      %p397 = pnand %p395, %p396
      %p398 = pneg %p397
      // Predicated region
      $region65: #{tpu_custom_call.1} parent=5 // pred_check
        _
      $region66: #{tpu_custom_call.1} parent=5 // pred_check_branch
        %400 = sbr.rel (%p397) target = $region68
      $region67: #{tpu_custom_call.1} parent=5 // pred_region
        %s401 = ssub.s32 %s22, 1
        %s402 = sand.u32 %s61, 1
        %s403 = scalar_lea.sflag [#allocation3], %s402
        %s404 = sand.u32 %s61, 1
        %s405 = smul.addr %s404, 8
        %s406 = scalar_lea.vmem [#allocation2], %s405
        // Predicated region
        $region69: #{tpu_custom_call.1} parent=67 // pred_check
          %p407 = pneg %p74
        $region70: #{tpu_custom_call.1} parent=67 // pred_check_branch
          %409 = sbr.rel (%p407) target = $region72
        $region71: #{tpu_custom_call.1} parent=67 // pred_region
          %410 = dma.done %s403, 128
        $region72: #{tpu_custom_call.1} parent=67 // pred_fallthru
          _
        // Predicated region
        $region73: #{tpu_custom_call.1} parent=67 // pred_check
          %p411 = pneg %p158
        $region74: #{tpu_custom_call.1} parent=67 // pred_check_branch
          %413 = sbr.rel (%p411) target = $region76
        $region75: #{tpu_custom_call.1} parent=67 // pred_region
          %414 = dma.done [#allocation5], 256
        $region76: #{tpu_custom_call.1} parent=67 // pred_fallthru
          _
        %p415 = scmp.lt.s32.totalorder %s27, 1
        %s416 = scalar_select %p415, %s27, 1
        %s417 = smul.addr %s416, 4
        %s418 = smul.addr %s417, 8
        %s419 = scalar_lea.vmem %s0, %s418
        %p420 = pneg %p48
        %p421 = pneg %p45
        %s422 = sand.u32 %s61, 1
        %s423 = scalar_lea.sflag [#allocation3], %s422
        %s424 = sand.u32 %s61, 1
        %s425 = smul.addr %s424, 8
        %s426 = scalar_lea.vmem [#allocation2], %s425
        %p427 = pneg %p74
        %p428 = pneg %p71
        %p429 = pneg %p95
        %p430 = pneg %p92
        %p431 = pneg %p116
        %p432 = pneg %p113
        %p433 = pneg %p137
        %p434 = pneg %p134
        %p435 = pneg %p158
        %p436 = pneg %p155
        %p437 = pneg %p179
        %p438 = pneg %p176
        %p439 = pneg %p200
        %p440 = pneg %p197
        %p441 = pneg %p221
        %p442 = pneg %p218
        %p443 = pneg %p242
        %p444 = pneg %p239
        %p445 = pneg %p263
        %p446 = pneg %p260
        %p447 = pneg %p284
        %p448 = pneg %p281
        %p449 = pneg %p310
        %p450 = pneg %p307
        %p451 = scmp.lt.s32.totalorder %s27, 1
        %s452 = scalar_select %p451, %s27, 1
        %s453 = smul.addr %s452, 4
        %s454 = smul.addr %s453, 8
        %s455 = scalar_lea.vmem %s12, %s454
        %p456 = scmp.lt.s32.totalorder %s27, 1
        %s457 = scalar_select %p456, %s27, 1
        %s458 = smul.addr %s457, 4
        %s459 = smul.addr %s458, 8
        %s460 = scalar_lea.vmem %s0, %s459
        %p461 = scmp.lt.s32.totalorder %s27, 1
        %s462 = scalar_select %p461, %s27, 1
        %s463 = smul.addr %s462, 4
        %s464 = smul.addr %s463, 8
        %s465 = scalar_lea.vmem %s12, %s464
        %v466 = vld [vmem:[%s2] sm:$0xff]
        %v467 = vld [vmem:[%s2 + $0x8] sm:$0xff]
        %v468 = vld [vmem:[%s2 + $0x10] sm:$0xff]
        %v469 = vld [vmem:[%s2 + $0x18] sm:$0xff]
        %v470 = vld [vmem:[%s3] sm:$0xff]
        %v471 = vld [vmem:[%s3 + $0x8] sm:$0xff]
        %v472 = vld [vmem:[%s3 + $0x10] sm:$0xff]
        %v473 = vld [vmem:[%s3 + $0x18] sm:$0xff]
        %v474 = vld [vmem:[%s4] sm:$0xff]
        %v475 = vld [vmem:[%s4 + $0x8] sm:$0xff]
        %v476 = vld [vmem:[%s4 + $0x10] sm:$0xff]
        %v477 = vld [vmem:[%s4 + $0x18] sm:$0xff]
        %v478 = vld [vmem:[#allocation4] sm:$0xff]
        %v479 = vld [vmem:[#allocation4 + $0x8] sm:$0xff]
        %v480 = vld [vmem:[%s6] sm:$0x1]
        %v481 = vld [vmem:[%s7] sm:$0xff]
        %v482 = vld [vmem:[%s7 + $0x8] sm:$0xff]
        %v483 = vld [vmem:[%s7 + $0x10] sm:$0xff]
        %v484 = vld [vmem:[%s7 + $0x18] sm:$0xff]
        %v485 = vld [vmem:[%s8] sm:$0xff]
        %v486 = vld [vmem:[%s8 + $0x8] sm:$0xff]
        %v487 = vld [vmem:[%s8 + $0x10] sm:$0xff]
        %v488 = vld [vmem:[%s8 + $0x18] sm:$0xff]
        %v489 = vld [vmem:[%s9] sm:$0xff]
        %v490 = vld [vmem:[%s9 + $0x8] sm:$0xff]
        %v491 = vld [vmem:[%s9 + $0x10] sm:$0xff]
        %v492 = vld [vmem:[%s9 + $0x18] sm:$0xff]
        %v493 = vld [vmem:[%s10] sm:$0xff]
        %v494 = vld [vmem:[%s10 + $0x8] sm:$0xff]
        %v495 = vld [vmem:[%s10 + $0x10] sm:$0xff]
        %v496 = vld [vmem:[%s10 + $0x18] sm:$0xff]
        %v497 = vld [vmem:[%s11] sm:$0xf]
        %v498 = vld [vmem:[%s460] sm:$0xff]
        %v499 = vld [vmem:[%s460 + $0x8] sm:$0xff]
        %v500 = vld [vmem:[%s460 + $0x10] sm:$0xff]
        %v501 = vld [vmem:[%s460 + $0x18] sm:$0xff]
        %v502 = vld [vmem:[%s406] sm:$0xff]
        %503 = vxpose.xlu0.b32.start [1/16] %v498, 128
        %504 = vxpose.xlu0.b32.cont [2/16] %v499, 128
        %505 = vxpose.xlu0.b32.cont [3/16] %v500, 128
        %506 = vxpose.xlu0.b32.cont [4/16] %v501, 128
        %507 = vxpose.xlu0.b32.cont [5/16] 0.0, 128
        %508 = vxpose.xlu0.b32.cont [6/16] 0.0, 128
        %509 = vxpose.xlu0.b32.cont [7/16] 0.0, 128
        %510 = vxpose.xlu0.b32.cont [8/16] 0.0, 128
        %511 = vxpose.xlu0.b32.cont [9/16] 0.0, 128
        %512 = vxpose.xlu0.b32.cont [10/16] 0.0, 128
        %513 = vxpose.xlu0.b32.cont [11/16] 0.0, 128
        %514 = vxpose.xlu0.b32.cont [12/16] 0.0, 128
        %515 = vxpose.xlu0.b32.cont [13/16] 0.0, 128
        %516 = vxpose.xlu0.b32.cont [14/16] 0.0, 128
        %517 = vxpose.xlu0.b32.cont [15/16] 0.0, 128
        %518 = vxpose.xlu0.b32.end [16/16] 0.0, 128
        %v519 = vpop.trf.xlu0
        %v520 = vpop.trf.xlu0
        %v521 = vpop.trf.xlu0
        %v522 = vpop.trf.xlu0
        %v523 = vpop.trf.xlu0
        %v524 = vpop.trf.xlu0
        %v525 = vpop.trf.xlu0
        %v526 = vpop.trf.xlu0
        %v527 = vpop.trf.xlu0
        %v528 = vpop.trf.xlu0
        %v529 = vpop.trf.xlu0
        %v530 = vpop.trf.xlu0
        %v531 = vpop.trf.xlu0
        %v532 = vpop.trf.xlu0
        %v533 = vpop.trf.xlu0
        %v534 = vpop.trf.xlu0
        %vm535 = vcmask 261120
        %v537 = vsel %vm535, %v519, 0
        %v540 = vsel %vm535, %v520, 0
        %542 = vmatprep.subr.mxu0 0.0
        %543 = vmatpush1.msra.mxu0 %v466
        %544 = vmatprep.subr.mxu0 0.0
        %545 = vmatpush1.msra.mxu0 %v467
        %546 = vmatprep.subr.mxu0 0.0
        %547 = vmatpush1.msra.mxu0 %v468
        %548 = vmatprep.subr.mxu0 0.0
        %549 = vmatpush1.msra.mxu0 %v469
        %550 = vmatprep.subr.mxu0 0.0
        %551 = vmatpush1.msra.mxu0 0.0
        %552 = vmatprep.subr.mxu0 0.0
        %553 = vmatpush1.msra.mxu0 0.0
        %554 = vmatprep.subr.mxu0 0.0
        %555 = vmatpush1.msra.mxu0 0.0
        %556 = vmatprep.subr.mxu0 0.0
        %557 = vmatpush1.msra.mxu0 0.0
        %558 = vmatprep.subr.mxu0 0.0
        %559 = vmatpush1.msra.mxu0 0.0
        %560 = vmatprep.subr.mxu0 0.0
        %561 = vmatpush1.msra.mxu0 0.0
        %562 = vmatprep.subr.mxu0 0.0
        %563 = vmatpush1.msra.mxu0 0.0
        %564 = vmatprep.subr.mxu0 0.0
        %565 = vmatpush1.msra.mxu0 0.0
        %566 = vmatprep.subr.mxu0 0.0
        %567 = vmatpush1.msra.mxu0 0.0
        %568 = vmatprep.subr.mxu0 0.0
        %569 = vmatpush1.msra.mxu0 0.0
        %570 = vmatprep.subr.mxu0 0.0
        %571 = vmatpush1.msra.mxu0 0.0
        %572 = vmatprep.subr.mxu0 0.0
        %573 = vmatpush1.msra.mxu0 0.0
        %574 = vmatprep.subr.mxu0 0.0
        %575 = vmatpush1.msra.mxu0 0.0
        %576 = vmatprep.subr.mxu0 0.0
        %577 = vmatpush1.msra.mxu0 0.0
        %578 = vmatprep.subr.mxu0 0.0
        %579 = vmatpush1.msra.mxu0 0.0
        %580 = vmatprep.subr.mxu0 0.0
        %581 = vmatpush1.msra.mxu0 0.0
        %582 = vmatprep.subr.mxu0 0.0
        %583 = vmatpush1.msra.mxu0 0.0
        %584 = vmatprep.subr.mxu0 0.0
        %585 = vmatpush1.msra.mxu0 0.0
        %586 = vmatprep.subr.mxu0 0.0
        %587 = vmatpush1.msra.mxu0 0.0
        %588 = vmatprep.subr.mxu0 0.0
        %589 = vmatpush1.msra.mxu0 0.0
        %590 = vmatprep.subr.mxu0 0.0
        %591 = vmatpush1.msra.mxu0 0.0
        %592 = vmatprep.subr.mxu0 0.0
        %593 = vmatpush1.msra.mxu0 0.0
        %594 = vmatprep.subr.mxu0 0.0
        %595 = vmatpush1.msra.mxu0 0.0
        %596 = vmatprep.subr.mxu0 0.0
        %597 = vmatpush1.msra.mxu0 0.0
        %598 = vmatprep.subr.mxu0 0.0
        %599 = vmatpush1.msra.mxu0 0.0
        %600 = vmatprep.subr.mxu0 0.0
        %601 = vmatpush1.msra.mxu0 0.0
        %602 = vmatprep.subr.mxu0 0.0
        %603 = vmatpush1.msra.mxu0 0.0
        %604 = vmatprep.subr.mxu0 0.0
        %605 = vmatpush1.msra.mxu0 0.0
        %606 = vmatprep.mubr.f32.mxu0 0.0
        %607 = vmatmul.mubr.f32.gmra.mrb[0].mxu0 %v537
        %v608 = vpop.f32.mrb[0].mxu0
        %v609 = vadd.f32 %v478, %v608
        %v610 = vpop.f32.mrb[0].mxu0
        %611 = vmatprep.mubr.f32.mxu0 0.0
        %612 = vmatmul.mubr.f32.gmra.mrb[0].mxu0 %v540
        %v613 = vpop.f32.mrb[0].mxu0
        %v614 = vadd.f32 %v479, %v613
        %v615 = vpop.f32.mrb[0].mxu0
        %616 = vdwg.mxu0
        %v618 = vlaneseq
        %v619 = vshrl.u32 %v618, 7
        %v620 = vsub.s32 0, %v619
        %v621 = vrot.slane %v480, %v620
        %v624 = vsel %vm535, %v502, 0
        %626 = vmatprep.subr.mxu0 0.0
        %627 = vmatpush1.msra.mxu0 %v470
        %628 = vmatprep.subr.mxu0 0.0
        %629 = vmatpush1.msra.mxu0 %v471
        %630 = vmatprep.subr.mxu0 0.0
        %631 = vmatpush1.msra.mxu0 %v472
        %632 = vmatprep.subr.mxu0 0.0
        %633 = vmatpush1.msra.mxu0 %v473
        %634 = vmatprep.subr.mxu0 0.0
        %635 = vmatpush1.msra.mxu0 0.0
        %636 = vmatprep.subr.mxu0 0.0
        %637 = vmatpush1.msra.mxu0 0.0
        %638 = vmatprep.subr.mxu0 0.0
        %639 = vmatpush1.msra.mxu0 0.0
        %640 = vmatprep.subr.mxu0 0.0
        %641 = vmatpush1.msra.mxu0 0.0
        %642 = vmatprep.subr.mxu0 0.0
        %643 = vmatpush1.msra.mxu0 0.0
        %644 = vmatprep.subr.mxu0 0.0
        %645 = vmatpush1.msra.mxu0 0.0
        %646 = vmatprep.subr.mxu0 0.0
        %647 = vmatpush1.msra.mxu0 0.0
        %648 = vmatprep.subr.mxu0 0.0
        %649 = vmatpush1.msra.mxu0 0.0
        %650 = vmatprep.subr.mxu0 0.0
        %651 = vmatpush1.msra.mxu0 0.0
        %652 = vmatprep.subr.mxu0 0.0
        %653 = vmatpush1.msra.mxu0 0.0
        %654 = vmatprep.subr.mxu0 0.0
        %655 = vmatpush1.msra.mxu0 0.0
        %656 = vmatprep.subr.mxu0 0.0
        %657 = vmatpush1.msra.mxu0 0.0
        %658 = vmatprep.subr.mxu0 0.0
        %659 = vmatpush1.msra.mxu0 0.0
        %660 = vmatprep.subr.mxu0 0.0
        %661 = vmatpush1.msra.mxu0 0.0
        %662 = vmatprep.subr.mxu0 0.0
        %663 = vmatpush1.msra.mxu0 0.0
        %664 = vmatprep.subr.mxu0 0.0
        %665 = vmatpush1.msra.mxu0 0.0
        %666 = vmatprep.subr.mxu0 0.0
        %667 = vmatpush1.msra.mxu0 0.0
        %668 = vmatprep.subr.mxu0 0.0
        %669 = vmatpush1.msra.mxu0 0.0
        %670 = vmatprep.subr.mxu0 0.0
        %671 = vmatpush1.msra.mxu0 0.0
        %672 = vmatprep.subr.mxu0 0.0
        %673 = vmatpush1.msra.mxu0 0.0
        %674 = vmatprep.subr.mxu0 0.0
        %675 = vmatpush1.msra.mxu0 0.0
        %676 = vmatprep.subr.mxu0 0.0
        %677 = vmatpush1.msra.mxu0 0.0
        %678 = vmatprep.subr.mxu0 0.0
        %679 = vmatpush1.msra.mxu0 0.0
        %680 = vmatprep.subr.mxu0 0.0
        %681 = vmatpush1.msra.mxu0 0.0
        %682 = vmatprep.subr.mxu0 0.0
        %683 = vmatpush1.msra.mxu0 0.0
        %684 = vmatprep.subr.mxu0 0.0
        %685 = vmatpush1.msra.mxu0 0.0
        %686 = vmatprep.subr.mxu0 0.0
        %687 = vmatpush1.msra.mxu0 0.0
        %688 = vmatprep.subr.mxu0 0.0
        %689 = vmatpush1.msra.mxu0 0.0
        %690 = vmatprep.mubr.f32.mxu0 0.0
        %691 = vmatmul.mubr.f32.gmra.mrb[0].mxu0 %v624
        %v692 = vpop.f32.mrb[0].mxu0
        %v693 = vadd.f32 %v621, %v692
        %v694 = vpop.f32.mrb[0].mxu0
        %695 = vdwg.mxu0
        %696 = vxpose.xlu0.b32.start [1/16] %v693, 128
        %697 = vxpose.xlu0.b32.cont [2/16] 0.0, 128
        %698 = vxpose.xlu0.b32.cont [3/16] 0.0, 128
        %699 = vxpose.xlu0.b32.cont [4/16] 0.0, 128
        %700 = vxpose.xlu0.b32.cont [5/16] 0.0, 128
        %701 = vxpose.xlu0.b32.cont [6/16] 0.0, 128
        %702 = vxpose.xlu0.b32.cont [7/16] 0.0, 128
        %703 = vxpose.xlu0.b32.cont [8/16] 0.0, 128
        %704 = vxpose.xlu0.b32.cont [9/16] 0.0, 128
        %705 = vxpose.xlu0.b32.cont [10/16] 0.0, 128
        %706 = vxpose.xlu0.b32.cont [11/16] 0.0, 128
        %707 = vxpose.xlu0.b32.cont [12/16] 0.0, 128
        %708 = vxpose.xlu0.b32.cont [13/16] 0.0, 128
        %709 = vxpose.xlu0.b32.cont [14/16] 0.0, 128
        %710 = vxpose.xlu0.b32.cont [15/16] 0.0, 128
        %711 = vxpose.xlu0.b32.end [16/16] 0.0, 128
        %v712 = vpop.trf.xlu0
        %v713 = vpop.trf.xlu0
        %v714 = vpop.trf.xlu0
        %v715 = vpop.trf.xlu0
        %v716 = vpop.trf.xlu0
        %v717 = vpop.trf.xlu0
        %v718 = vpop.trf.xlu0
        %v719 = vpop.trf.xlu0
        %v720 = vpop.trf.xlu0
        %v721 = vpop.trf.xlu0
        %v722 = vpop.trf.xlu0
        %v723 = vpop.trf.xlu0
        %v724 = vpop.trf.xlu0
        %v725 = vpop.trf.xlu0
        %v726 = vpop.trf.xlu0
        %v727 = vpop.trf.xlu0
        %732 = vrot.lane.b32.xlu0 %v712, 8
        %v733 = vpop.permute.xlu0 %732
        %734 = vrot.lane.b32.xlu0 %v713, 8
        %v735 = vpop.permute.xlu0 %734
        %736 = vrot.lane.b32.xlu0 %v714, 8
        %v737 = vpop.permute.xlu0 %736
        %738 = vrot.lane.b32.xlu0 %v715, 8
        %v739 = vpop.permute.xlu0 %738
        %744 = vrot.lane.b32.xlu0 %v712, 16
        %v745 = vpop.permute.xlu0 %744
        %746 = vrot.lane.b32.xlu0 %v713, 16
        %v747 = vpop.permute.xlu0 %746
        %748 = vrot.lane.b32.xlu0 %v714, 16
        %v749 = vpop.permute.xlu0 %748
        %750 = vrot.lane.b32.xlu0 %v715, 16
        %v751 = vpop.permute.xlu0 %750
        %756 = vrot.lane.b32.xlu0 %v712, 24
        %v757 = vpop.permute.xlu0 %756
        %758 = vrot.lane.b32.xlu0 %v713, 24
        %v759 = vpop.permute.xlu0 %758
        %760 = vrot.lane.b32.xlu0 %v714, 24
        %v761 = vpop.permute.xlu0 %760
        %762 = vrot.lane.b32.xlu0 %v715, 24
        %v763 = vpop.permute.xlu0 %762
        %vm768 = vcmask 64512
        %v769 = vsel %vm768, %v712, %v733
        %v770 = vsel %vm768, %v713, %v735
        %v771 = vsel %vm768, %v714, %v737
        %v772 = vsel %vm768, %v715, %v739
        %vm773 = vcmask 130048
        %v774 = vsel %vm773, %v769, %v745
        %v775 = vsel %vm773, %v770, %v747
        %v776 = vsel %vm773, %v771, %v749
        %v777 = vsel %vm773, %v772, %v751
        %vm778 = vcmask 195584
        %v779 = vsel %vm778, %v774, %v757
        %v780 = vsel %vm778, %v775, %v759
        %v781 = vsel %vm778, %v776, %v761
        %v782 = vsel %vm778, %v777, %v763
        %v783 = vmul.f32 %v779, %v485
        %v784 = vmul.f32 %v780, %v486
        %v785 = vmul.f32 %v781, %v487
        %v786 = vmul.f32 %v782, %v488
        %791 = vrot.lane.b32.xlu0 %v489, 32
        %v792 = vpop.permute.xlu0 %791
        %793 = vrot.lane.b32.xlu0 %v490, 32
        %v794 = vpop.permute.xlu0 %793
        %795 = vrot.lane.b32.xlu0 %v491, 32
        %v796 = vpop.permute.xlu0 %795
        %797 = vrot.lane.b32.xlu0 %v492, 32
        %v798 = vpop.permute.xlu0 %797
        %v803 = vmul.f32 %v693, %v792
        %v804 = vmul.f32 %v693, %v794
        %v805 = vmul.f32 %v693, %v796
        %v806 = vmul.f32 %v693, %v798
        %v808 = vsel %vm535, %v609, 0
        %v811 = vsel %vm535, %v614, 0
        %813 = vmatprep.subr.mxu0 0.0
        %814 = vmatpush1.msra.mxu0 %v783
        %815 = vmatprep.subr.mxu0 0.0
        %816 = vmatpush1.msra.mxu0 %v784
        %817 = vmatprep.subr.mxu0 0.0
        %818 = vmatpush1.msra.mxu0 %v785
        %819 = vmatprep.subr.mxu0 0.0
        %820 = vmatpush1.msra.mxu0 %v786
        %821 = vmatprep.subr.mxu0 0.0
        %822 = vmatpush1.msra.mxu0 0.0
        %823 = vmatprep.subr.mxu0 0.0
        %824 = vmatpush1.msra.mxu0 0.0
        %825 = vmatprep.subr.mxu0 0.0
        %826 = vmatpush1.msra.mxu0 0.0
        %827 = vmatprep.subr.mxu0 0.0
        %828 = vmatpush1.msra.mxu0 0.0
        %829 = vmatprep.subr.mxu0 0.0
        %830 = vmatpush1.msra.mxu0 0.0
        %831 = vmatprep.subr.mxu0 0.0
        %832 = vmatpush1.msra.mxu0 0.0
        %833 = vmatprep.subr.mxu0 0.0
        %834 = vmatpush1.msra.mxu0 0.0
        %835 = vmatprep.subr.mxu0 0.0
        %836 = vmatpush1.msra.mxu0 0.0
        %837 = vmatprep.subr.mxu0 0.0
        %838 = vmatpush1.msra.mxu0 0.0
        %839 = vmatprep.subr.mxu0 0.0
        %840 = vmatpush1.msra.mxu0 0.0
        %841 = vmatprep.subr.mxu0 0.0
        %842 = vmatpush1.msra.mxu0 0.0
        %843 = vmatprep.subr.mxu0 0.0
        %844 = vmatpush1.msra.mxu0 0.0
        %845 = vmatprep.subr.mxu0 0.0
        %846 = vmatpush1.msra.mxu0 0.0
        %847 = vmatprep.subr.mxu0 0.0
        %848 = vmatpush1.msra.mxu0 0.0
        %849 = vmatprep.subr.mxu0 0.0
        %850 = vmatpush1.msra.mxu0 0.0
        %851 = vmatprep.subr.mxu0 0.0
        %852 = vmatpush1.msra.mxu0 0.0
        %853 = vmatprep.subr.mxu0 0.0
        %854 = vmatpush1.msra.mxu0 0.0
        %855 = vmatprep.subr.mxu0 0.0
        %856 = vmatpush1.msra.mxu0 0.0
        %857 = vmatprep.subr.mxu0 0.0
        %858 = vmatpush1.msra.mxu0 0.0
        %859 = vmatprep.subr.mxu0 0.0
        %860 = vmatpush1.msra.mxu0 0.0
        %861 = vmatprep.subr.mxu0 0.0
        %862 = vmatpush1.msra.mxu0 0.0
        %863 = vmatprep.subr.mxu0 0.0
        %864 = vmatpush1.msra.mxu0 0.0
        %865 = vmatprep.subr.mxu0 0.0
        %866 = vmatpush1.msra.mxu0 0.0
        %867 = vmatprep.subr.mxu0 0.0
        %868 = vmatpush1.msra.mxu0 0.0
        %869 = vmatprep.subr.mxu0 0.0
        %870 = vmatpush1.msra.mxu0 0.0
        %871 = vmatprep.subr.mxu0 0.0
        %872 = vmatpush1.msra.mxu0 0.0
        %873 = vmatprep.subr.mxu0 0.0
        %874 = vmatpush1.msra.mxu0 0.0
        %875 = vmatprep.subr.mxu0 0.0
        %876 = vmatpush1.msra.mxu0 0.0
        %877 = vmatprep.mubr.f32.mxu0 0.0
        %878 = vmatmul.mubr.f32.gmra.mrb[0].mxu0 %v808
        %v879 = vpop.f32.mrb[0].mxu0
        %v880 = vadd.f32 0.0, %v879
        %v881 = vpop.f32.mrb[0].mxu0
        %882 = vmatprep.mubr.f32.mxu0 0.0
        %883 = vmatmul.mubr.f32.gmra.mrb[0].mxu0 %v811
        %v884 = vpop.f32.mrb[0].mxu0
        %v885 = vadd.f32 0.0, %v884
        %v886 = vpop.f32.mrb[0].mxu0
        %887 = vdwg.mxu0
        %v888 = vsel %vm535, %v880, -inf
        %889 = vmax.xlane.f32.xlu0 %v888
        %v890 = vpop.xlane.xlu0 %889
        %v891 = vsel %vm535, %v885, -inf
        %892 = vmax.xlane.f32.xlu0 %v891
        %v893 = vpop.xlane.xlu0 %892
        %v894 = vsub.f32 %v880, %v890
        %v895 = vsub.f32 %v885, %v893
        %v896 = vmul.f32 %v894, 1.442695
        %v897 = vpow.pop %v896
        %v898 = vmul.f32 %v895, 1.442695
        %v899 = vpow.pop %v898
        %v901 = vsel %vm535, %v897, 0
        %v904 = vsel %vm535, %v899, 0
        %906 = vmatprep.subr.mxu0 0.0
        %907 = vmatpush1.msra.mxu0 %v493
        %908 = vmatprep.subr.mxu0 0.0
        %909 = vmatpush1.msra.mxu0 %v494
        %910 = vmatprep.subr.mxu0 0.0
        %911 = vmatpush1.msra.mxu0 %v495
        %912 = vmatprep.subr.mxu0 0.0
        %913 = vmatpush1.msra.mxu0 %v496
        %914 = vmatprep.subr.mxu0 0.0
        %915 = vmatpush1.msra.mxu0 0.0
        %916 = vmatprep.subr.mxu0 0.0
        %917 = vmatpush1.msra.mxu0 0.0
        %918 = vmatprep.subr.mxu0 0.0
        %919 = vmatpush1.msra.mxu0 0.0
        %920 = vmatprep.subr.mxu0 0.0
        %921 = vmatpush1.msra.mxu0 0.0
        %922 = vmatprep.subr.mxu0 0.0
        %923 = vmatpush1.msra.mxu0 0.0
        %924 = vmatprep.subr.mxu0 0.0
        %925 = vmatpush1.msra.mxu0 0.0
        %926 = vmatprep.subr.mxu0 0.0
        %927 = vmatpush1.msra.mxu0 0.0
        %928 = vmatprep.subr.mxu0 0.0
        %929 = vmatpush1.msra.mxu0 0.0
        %930 = vmatprep.subr.mxu0 0.0
        %931 = vmatpush1.msra.mxu0 0.0
        %932 = vmatprep.subr.mxu0 0.0
        %933 = vmatpush1.msra.mxu0 0.0
        %934 = vmatprep.subr.mxu0 0.0
        %935 = vmatpush1.msra.mxu0 0.0
        %936 = vmatprep.subr.mxu0 0.0
        %937 = vmatpush1.msra.mxu0 0.0
        %938 = vmatprep.subr.mxu0 0.0
        %939 = vmatpush1.msra.mxu0 0.0
        %940 = vmatprep.subr.mxu0 0.0
        %941 = vmatpush1.msra.mxu0 0.0
        %942 = vmatprep.subr.mxu0 0.0
        %943 = vmatpush1.msra.mxu0 0.0
        %944 = vmatprep.subr.mxu0 0.0
        %945 = vmatpush1.msra.mxu0 0.0
        %946 = vmatprep.subr.mxu0 0.0
        %947 = vmatpush1.msra.mxu0 0.0
        %948 = vmatprep.subr.mxu0 0.0
        %949 = vmatpush1.msra.mxu0 0.0
        %950 = vmatprep.subr.mxu0 0.0
        %951 = vmatpush1.msra.mxu0 0.0
        %952 = vmatprep.subr.mxu0 0.0
        %953 = vmatpush1.msra.mxu0 0.0
        %954 = vmatprep.subr.mxu0 0.0
        %955 = vmatpush1.msra.mxu0 0.0
        %956 = vmatprep.subr.mxu0 0.0
        %957 = vmatpush1.msra.mxu0 0.0
        %958 = vmatprep.subr.mxu0 0.0
        %959 = vmatpush1.msra.mxu0 0.0
        %960 = vmatprep.subr.mxu0 0.0
        %961 = vmatpush1.msra.mxu0 0.0
        %962 = vmatprep.subr.mxu0 0.0
        %963 = vmatpush1.msra.mxu0 0.0
        %964 = vmatprep.subr.mxu0 0.0
        %965 = vmatpush1.msra.mxu0 0.0
        %966 = vmatprep.subr.mxu0 0.0
        %967 = vmatpush1.msra.mxu0 0.0
        %968 = vmatprep.subr.mxu0 0.0
        %969 = vmatpush1.msra.mxu0 0.0
        %970 = vmatprep.mubr.f32.mxu0 0.0
        %971 = vmatmul.mubr.f32.gmra.mrb[0].mxu0 %v901
        %v972 = vpop.f32.mrb[0].mxu0
        %v973 = vadd.f32 0.0, %v972
        %v974 = vpop.f32.mrb[0].mxu0
        %975 = vmatprep.mubr.f32.mxu0 0.0
        %976 = vmatmul.mubr.f32.gmra.mrb[0].mxu0 %v904
        %v977 = vpop.f32.mrb[0].mxu0
        %v978 = vadd.f32 0.0, %v977
        %v979 = vpop.f32.mrb[0].mxu0
        %980 = vdwg.mxu0
        %vm981 = vcmask 31744
        %v983 = vsel %vm981, %v973, 0
        %v986 = vsel %vm981, %v978, 0
        %vm988 = vcmask 1043456
        %v990 = vsel %vm988, %v497, 0
        %992 = vmatprep.subr.mxu0 0.0
        %993 = vmatpush1.msra.mxu0 %v990
        %994 = vmatprep.subr.mxu0 0.0
        %995 = vmatpush1.msra.mxu0 0.0
        %996 = vmatprep.subr.mxu0 0.0
        %997 = vmatpush1.msra.mxu0 0.0
        %998 = vmatprep.subr.mxu0 0.0
        %999 = vmatpush1.msra.mxu0 0.0
        %1000 = vmatprep.subr.mxu0 0.0
        %1001 = vmatpush1.msra.mxu0 0.0
        %1002 = vmatprep.subr.mxu0 0.0
        %1003 = vmatpush1.msra.mxu0 0.0
        %1004 = vmatprep.subr.mxu0 0.0
        %1005 = vmatpush1.msra.mxu0 0.0
        %1006 = vmatprep.subr.mxu0 0.0
        %1007 = vmatpush1.msra.mxu0 0.0
        %1008 = vmatprep.subr.mxu0 0.0
        %1009 = vmatpush1.msra.mxu0 0.0
        %1010 = vmatprep.subr.mxu0 0.0
        %1011 = vmatpush1.msra.mxu0 0.0
        %1012 = vmatprep.subr.mxu0 0.0
        %1013 = vmatpush1.msra.mxu0 0.0
        %1014 = vmatprep.subr.mxu0 0.0
        %1015 = vmatpush1.msra.mxu0 0.0
        %1016 = vmatprep.subr.mxu0 0.0
        %1017 = vmatpush1.msra.mxu0 0.0
        %1018 = vmatprep.subr.mxu0 0.0
        %1019 = vmatpush1.msra.mxu0 0.0
        %1020 = vmatprep.subr.mxu0 0.0
        %1021 = vmatpush1.msra.mxu0 0.0
        %1022 = vmatprep.subr.mxu0 0.0
        %1023 = vmatpush1.msra.mxu0 0.0
        %1024 = vmatprep.subr.mxu0 0.0
        %1025 = vmatpush1.msra.mxu0 0.0
        %1026 = vmatprep.subr.mxu0 0.0
        %1027 = vmatpush1.msra.mxu0 0.0
        %1028 = vmatprep.subr.mxu0 0.0
        %1029 = vmatpush1.msra.mxu0 0.0
        %1030 = vmatprep.subr.mxu0 0.0
        %1031 = vmatpush1.msra.mxu0 0.0
        %1032 = vmatprep.subr.mxu0 0.0
        %1033 = vmatpush1.msra.mxu0 0.0
        %1034 = vmatprep.subr.mxu0 0.0
        %1035 = vmatpush1.msra.mxu0 0.0
        %1036 = vmatprep.subr.mxu0 0.0
        %1037 = vmatpush1.msra.mxu0 0.0
        %1038 = vmatprep.subr.mxu0 0.0
        %1039 = vmatpush1.msra.mxu0 0.0
        %1040 = vmatprep.subr.mxu0 0.0
        %1041 = vmatpush1.msra.mxu0 0.0
        %1042 = vmatprep.subr.mxu0 0.0
        %1043 = vmatpush1.msra.mxu0 0.0
        %1044 = vmatprep.subr.mxu0 0.0
        %1045 = vmatpush1.msra.mxu0 0.0
        %1046 = vmatprep.subr.mxu0 0.0
        %1047 = vmatpush1.msra.mxu0 0.0
        %1048 = vmatprep.subr.mxu0 0.0
        %1049 = vmatpush1.msra.mxu0 0.0
        %1050 = vmatprep.subr.mxu0 0.0
        %1051 = vmatpush1.msra.mxu0 0.0
        %1052 = vmatprep.subr.mxu0 0.0
        %1053 = vmatpush1.msra.mxu0 0.0
        %1054 = vmatprep.subr.mxu0 0.0
        %1055 = vmatpush1.msra.mxu0 0.0
        %1056 = vmatprep.mubr.f32.mxu0 0.0
        %1057 = vmatmul.mubr.f32.gmra.mrb[0].mxu0 %v983
        %v1058 = vpop.f32.mrb[0].mxu0
        %v1059 = vadd.f32 0.0, %v1058
        %v1060 = vpop.f32.mrb[0].mxu0
        %1061 = vmatprep.mubr.f32.mxu0 0.0
        %1062 = vmatmul.mubr.f32.gmra.mrb[0].mxu0 %v986
        %v1063 = vpop.f32.mrb[0].mxu0
        %v1064 = vadd.f32 0.0, %v1063
        %v1065 = vpop.f32.mrb[0].mxu0
        %1066 = vdwg.mxu0
        %v1067 = vrcp.pop %v1059
        %v1068 = vrcp.pop %v1064
        %v1069 = vmul.f32 %v897, %v1067
        %v1070 = vmul.f32 %v899, %v1068
        %1075 = vrot.lane.b32.xlu0 %v803, 96
        %v1076 = vpop.permute.xlu0 %1075
        %1077 = vrot.lane.b32.xlu0 %v804, 96
        %v1078 = vpop.permute.xlu0 %1077
        %1079 = vrot.lane.b32.xlu0 %v805, 96
        %v1080 = vpop.permute.xlu0 %1079
        %1081 = vrot.lane.b32.xlu0 %v806, 96
        %v1082 = vpop.permute.xlu0 %1081
        %v1088 = vsel %vm535, %v1069, 0
        %v1091 = vsel %vm535, %v1070, 0
        %1093 = vmatprep.subr.mxu0 0.0
        %1094 = vmatpush1.msra.mxu0 %v1076
        %1095 = vmatprep.subr.mxu0 0.0
        %1096 = vmatpush1.msra.mxu0 %v1078
        %1097 = vmatprep.subr.mxu0 0.0
        %1098 = vmatpush1.msra.mxu0 %v1080
        %1099 = vmatprep.subr.mxu0 0.0
        %1100 = vmatpush1.msra.mxu0 %v1082
        %1101 = vmatprep.subr.mxu0 0.0
        %1102 = vmatpush1.msra.mxu0 0.0
        %1103 = vmatprep.subr.mxu0 0.0
        %1104 = vmatpush1.msra.mxu0 0.0
        %1105 = vmatprep.subr.mxu0 0.0
        %1106 = vmatpush1.msra.mxu0 0.0
        %1107 = vmatprep.subr.mxu0 0.0
        %1108 = vmatpush1.msra.mxu0 0.0
        %1109 = vmatprep.subr.mxu0 0.0
        %1110 = vmatpush1.msra.mxu0 0.0
        %1111 = vmatprep.subr.mxu0 0.0
        %1112 = vmatpush1.msra.mxu0 0.0
        %1113 = vmatprep.subr.mxu0 0.0
        %1114 = vmatpush1.msra.mxu0 0.0
        %1115 = vmatprep.subr.mxu0 0.0
        %1116 = vmatpush1.msra.mxu0 0.0
        %1117 = vmatprep.subr.mxu0 0.0
        %1118 = vmatpush1.msra.mxu0 0.0
        %1119 = vmatprep.subr.mxu0 0.0
        %1120 = vmatpush1.msra.mxu0 0.0
        %1121 = vmatprep.subr.mxu0 0.0
        %1122 = vmatpush1.msra.mxu0 0.0
        %1123 = vmatprep.subr.mxu0 0.0
        %1124 = vmatpush1.msra.mxu0 0.0
        %1125 = vmatprep.subr.mxu0 0.0
        %1126 = vmatpush1.msra.mxu0 0.0
        %1127 = vmatprep.subr.mxu0 0.0
        %1128 = vmatpush1.msra.mxu0 0.0
        %1129 = vmatprep.subr.mxu0 0.0
        %1130 = vmatpush1.msra.mxu0 0.0
        %1131 = vmatprep.subr.mxu0 0.0
        %1132 = vmatpush1.msra.mxu0 0.0
        %1133 = vmatprep.subr.mxu0 0.0
        %1134 = vmatpush1.msra.mxu0 0.0
        %1135 = vmatprep.subr.mxu0 0.0
        %1136 = vmatpush1.msra.mxu0 0.0
        %1137 = vmatprep.subr.mxu0 0.0
        %1138 = vmatpush1.msra.mxu0 0.0
        %1139 = vmatprep.subr.mxu0 0.0
        %1140 = vmatpush1.msra.mxu0 0.0
        %1141 = vmatprep.subr.mxu0 0.0
        %1142 = vmatpush1.msra.mxu0 0.0
        %1143 = vmatprep.subr.mxu0 0.0
        %1144 = vmatpush1.msra.mxu0 0.0
        %1145 = vmatprep.subr.mxu0 0.0
        %1146 = vmatpush1.msra.mxu0 0.0
        %1147 = vmatprep.subr.mxu0 0.0
        %1148 = vmatpush1.msra.mxu0 0.0
        %1149 = vmatprep.subr.mxu0 0.0
        %1150 = vmatpush1.msra.mxu0 0.0
        %1151 = vmatprep.subr.mxu0 0.0
        %1152 = vmatpush1.msra.mxu0 0.0
        %1153 = vmatprep.subr.mxu0 0.0
        %1154 = vmatpush1.msra.mxu0 0.0
        %1155 = vmatprep.subr.mxu0 0.0
        %1156 = vmatpush1.msra.mxu0 0.0
        %1157 = vmatprep.mubr.f32.mxu0 0.0
        %1158 = vmatmul.mubr.f32.gmra.mrb[0].mxu0 %v1088
        %v1159 = vpop.f32.mrb[0].mxu0
        %v1160 = vadd.f32 0.0, %v1159
        %v1161 = vpop.f32.mrb[0].mxu0
        %1162 = vmatprep.mubr.f32.mxu0 0.0
        %1163 = vmatmul.mubr.f32.gmra.mrb[0].mxu0 %v1091
        %v1164 = vpop.f32.mrb[0].mxu0
        %v1165 = vadd.f32 0.0, %v1164
        %v1166 = vpop.f32.mrb[0].mxu0
        %1167 = vdwg.mxu0
        %1169 = vset.pattern.permute.xlu0 0
        %1170 = vperm.xlu0 %1169, %v481
        %v1171 = vpop.permute.xlu0 %1170
        %1174 = vset.pattern.permute.xlu0 0
        %1175 = vperm.xlu0 %1174, %v482
        %v1176 = vpop.permute.xlu0 %1175
        %1179 = vset.pattern.permute.xlu0 0
        %1180 = vperm.xlu0 %1179, %v483
        %v1181 = vpop.permute.xlu0 %1180
        %1184 = vset.pattern.permute.xlu0 0
        %1185 = vperm.xlu0 %1184, %v484
        %v1186 = vpop.permute.xlu0 %1185
        %v1189 = vsel %vm535, %v474, 0
        %v1192 = vsel %vm535, %v475, 0
        %v1195 = vsel %vm535, %v476, 0
        %v1198 = vsel %vm535, %v477, 0
        %v1201 = vsel %vm535, %v1160, 0
        %v1204 = vsel %vm535, %v1165, 0
        %1206 = vmatprep.subr.mxu0 0.0
        %1207 = vmatpush1.xpose.msra.mxu0 %v1201
        %1208 = vmatprep.subr.mxu0 0.0
        %1209 = vmatpush1.xpose.msra.mxu0 %v1204
        %1210 = vmatprep.subr.mxu0 0.0
        %1211 = vmatpush1.xpose.msra.mxu0 0.0
        %1212 = vmatprep.subr.mxu0 0.0
        %1213 = vmatpush1.xpose.msra.mxu0 0.0
        %1214 = vmatprep.subr.mxu0 0.0
        %1215 = vmatpush1.xpose.msra.mxu0 0.0
        %1216 = vmatprep.subr.mxu0 0.0
        %1217 = vmatpush1.xpose.msra.mxu0 0.0
        %1218 = vmatprep.subr.mxu0 0.0
        %1219 = vmatpush1.xpose.msra.mxu0 0.0
        %1220 = vmatprep.subr.mxu0 0.0
        %1221 = vmatpush1.xpose.msra.mxu0 0.0
        %1222 = vmatprep.subr.mxu0 0.0
        %1223 = vmatpush1.xpose.msra.mxu0 0.0
        %1224 = vmatprep.subr.mxu0 0.0
        %1225 = vmatpush1.xpose.msra.mxu0 0.0
        %1226 = vmatprep.subr.mxu0 0.0
        %1227 = vmatpush1.xpose.msra.mxu0 0.0
        %1228 = vmatprep.subr.mxu0 0.0
        %1229 = vmatpush1.xpose.msra.mxu0 0.0
        %1230 = vmatprep.subr.mxu0 0.0
        %1231 = vmatpush1.xpose.msra.mxu0 0.0
        %1232 = vmatprep.subr.mxu0 0.0
        %1233 = vmatpush1.xpose.msra.mxu0 0.0
        %1234 = vmatprep.subr.mxu0 0.0
        %1235 = vmatpush1.xpose.msra.mxu0 0.0
        %1236 = vmatprep.subr.mxu0 0.0
        %1237 = vmatpush1.xpose.msra.mxu0 0.0
        %1238 = vmatprep.subr.mxu0 0.0
        %1239 = vmatpush1.xpose.msra.mxu0 0.0
        %1240 = vmatprep.subr.mxu0 0.0
        %1241 = vmatpush1.xpose.msra.mxu0 0.0
        %1242 = vmatprep.subr.mxu0 0.0
        %1243 = vmatpush1.xpose.msra.mxu0 0.0
        %1244 = vmatprep.subr.mxu0 0.0
        %1245 = vmatpush1.xpose.msra.mxu0 0.0
        %1246 = vmatprep.subr.mxu0 0.0
        %1247 = vmatpush1.xpose.msra.mxu0 0.0
        %1248 = vmatprep.subr.mxu0 0.0
        %1249 = vmatpush1.xpose.msra.mxu0 0.0
        %1250 = vmatprep.subr.mxu0 0.0
        %1251 = vmatpush1.xpose.msra.mxu0 0.0
        %1252 = vmatprep.subr.mxu0 0.0
        %1253 = vmatpush1.xpose.msra.mxu0 0.0
        %1254 = vmatprep.subr.mxu0 0.0
        %1255 = vmatpush1.xpose.msra.mxu0 0.0
        %1256 = vmatprep.subr.mxu0 0.0
        %1257 = vmatpush1.xpose.msra.mxu0 0.0
        %1258 = vmatprep.subr.mxu0 0.0
        %1259 = vmatpush1.xpose.msra.mxu0 0.0
        %1260 = vmatprep.subr.mxu0 0.0
        %1261 = vmatpush1.xpose.msra.mxu0 0.0
        %1262 = vmatprep.subr.mxu0 0.0
        %1263 = vmatpush1.xpose.msra.mxu0 0.0
        %1264 = vmatprep.subr.mxu0 0.0
        %1265 = vmatpush1.xpose.msra.mxu0 0.0
        %1266 = vmatprep.subr.mxu0 0.0
        %1267 = vmatpush1.xpose.msra.mxu0 0.0
        %1268 = vmatprep.subr.mxu0 0.0
        %1269 = vmatpush1.xpose.msra.mxu0 0.0
        %1270 = vmatprep.mubr.f32.mxu0 0.0
        %1271 = vmatmul.mubr.f32.gmra.mrb[0].mxu0 %v1189
        %v1272 = vpop.f32.mrb[0].mxu0
        %v1273 = vadd.f32 %v1171, %v1272
        %v1274 = vpop.f32.mrb[0].mxu0
        %1275 = vmatprep.mubr.f32.mxu0 0.0
        %1276 = vmatmul.mubr.f32.gmra.mrb[0].mxu0 %v1192
        %v1277 = vpop.f32.mrb[0].mxu0
        %v1278 = vadd.f32 %v1176, %v1277
        %v1279 = vpop.f32.mrb[0].mxu0
        %1280 = vmatprep.mubr.f32.mxu0 0.0
        %1281 = vmatmul.mubr.f32.gmra.mrb[0].mxu0 %v1195
        %v1282 = vpop.f32.mrb[0].mxu0
        %v1283 = vadd.f32 %v1181, %v1282
        %v1284 = vpop.f32.mrb[0].mxu0
        %1285 = vmatprep.mubr.f32.mxu0 0.0
        %1286 = vmatmul.mubr.f32.gmra.mrb[0].mxu0 %v1198
        %v1287 = vpop.f32.mrb[0].mxu0
        %v1288 = vadd.f32 %v1186, %v1287
        %v1289 = vpop.f32.mrb[0].mxu0
        %1290 = vdwg.mxu0
        %v1291 = vadd.f32 %v498, %v1273
        %v1292 = vadd.f32 %v499, %v1278
        %v1293 = vadd.f32 %v500, %v1283
        %v1294 = vadd.f32 %v501, %v1288
        %1295 = vst.msk [vmem:[%s465] sm:$0xff] %vm773, %v1291
        %1296 = vst.msk [vmem:[%s465 + $0x8] sm:$0xff] %vm773, %v1292
        %1297 = vst.msk [vmem:[%s465 + $0x10] sm:$0xff] %vm773, %v1293
        %1298 = vst.msk [vmem:[%s465 + $0x18] sm:$0xff] %vm773, %v1294
        %p1299 = scmp.lt.s32.totalorder %s27, 1
        %s1300 = scalar_select %p1299, %s27, 1
        %s1301 = smul.addr %s1300, 4
        %s1302 = smul.addr %s1301, 8
        %s1303 = scalar_lea.vmem %s12, %s1302
        // Predicated region
        $region77: #{tpu_custom_call.1} parent=67 // pred_check
          %p1304 = pneg %p307
        $region78: #{tpu_custom_call.1} parent=67 // pred_check_branch
          %1306 = sbr.rel (%p1304) target = $region80
        $region79: #{tpu_custom_call.1} parent=67 // pred_region
          _
        $region80: #{tpu_custom_call.1} parent=67 // pred_fallthru
          _
      $region68: #{tpu_custom_call.1} parent=5 // pred_fallthru
        _
      %p1307 = scmp.le.s32.totalorder 2, %s22
      // Predicated region
      $region81: #{tpu_custom_call.1} parent=5 // pred_check
        %p1308 = pneg %p1307
      $region82: #{tpu_custom_call.1} parent=5 // pred_check_branch
        %1310 = sbr.rel (%p1308) target = $region84
      $region83: #{tpu_custom_call.1} parent=5 // pred_region
        %s1311 = ssub.s32 %s22, 2
        // Predicated region
        $region85: #{tpu_custom_call.1} parent=83 // pred_check
          %p1312 = pneg %p313
        $region86: #{tpu_custom_call.1} parent=83 // pred_check_branch
          %1314 = sbr.rel (%p1312) target = $region88
        $region87: #{tpu_custom_call.1} parent=83 // pred_region
          %p1315 = scmp.lt.s32.totalorder %s28, 1
          %s1316 = scalar_select %p1315, %s28, 1
          %s1317 = smul.addr %s1316, 4
          %s1318 = smul.addr %s1317, 8
          %s1319 = scalar_lea.vmem %s12, %s1318
        $region88: #{tpu_custom_call.1} parent=83 // pred_fallthru
          _
      $region84: #{tpu_custom_call.1} parent=5 // pred_fallthru
        _
    $region6: #{tpu_custom_call.1} parent=1 // loop_footer
      %s26 = sadd.s32 1, %s22
    $region7: #{tpu_custom_call.1} parent=1 // loop_footer_branch
      %21 = sbr.rel target = $region3
    $region8: #{tpu_custom_call.1} parent=1 // loop_exit
      _
    %1320 = vsyncpa [#allocation3], 1
    %s1321 = scalar_lea.sflag [#allocation3], 1
    %1322 = vsyncpa %s1321, 1
    %1323 = vsyncpa [#allocation5], 1

</llo_original>
